<compile_context>
chip_gen: v7x
topology: tpu7x:2x2x1
jax: 0.10.0
libtpu: 0.0.40
codegen_flags: <defaults>
</compile_context>

<pallas_src>
import functools

import numpy as np
import jax
import jax.numpy as jnp
from jax.experimental import pallas as pl
from jax.experimental.pallas import tpu as pltpu


LANE = 128        # lane tile (last dim)
NODE_ALIGN = 16   # node-dim padding: covers bf16 (16,128) and f32 (8,128) tiles


def _round_up(v, m):
    return (v + m - 1) // m * m


# ----------------------------------------------------------------------------
# Kernel: one grid step == one graph.
# ----------------------------------------------------------------------------
def net_kernel(lam_ref, x_ref, a_ref, p1_ref, p2_ref, msk_ref,
               w1_ref, b1_ref, w2_ref, b2_ref, wl_ref, bl_ref, out_ref,
               *, c_out, mm_dtype):
    lam = lam_ref[0, 0]
    x = x_ref[0]                              # (Nmax, Cin_p) bf16 (pre-cast)
    a = a_ref[0]                              # (Nmax, Nmax) bf16 adjacency block
    n = a.shape[0]

    lane_ids = jax.lax.broadcasted_iota(jnp.int32, (n, n), 1)

    def graph_conv(h, w_ref, b_ref):
        # GraphConv(aggr="add"): h_i @ W_root + (sum_{j->i} h_j) @ W_nbr + b,
        # with the two weight matmuls fused into one stacked contraction.
        hb = h.astype(mm_dtype)
        agg = jnp.dot(a, hb, preferred_element_type=jnp.float32)      # (Nmax, C)
        stacked = jnp.concatenate([hb, agg.astype(mm_dtype)], axis=-1)
        return (jnp.dot(stacked, w_ref[...],
                        preferred_element_type=jnp.float32) + b_ref[...])

    def mixup(h, perm_ref):
        # h <- lam*h + (1-lam)*h[perm].  The permutation is applied as an exact
        # f32 one-hot matmul built in-kernel from the int32 index vector; no
        # dense [N,N] permutation operand is read from HBM.
        # TODO(synk): switch to a true sublane dynamic-gather when available.
        onehot = jnp.where(lane_ids == perm_ref[0], 1.0, 0.0)          # (Nmax, Nmax)
        h_perm = jnp.dot(onehot, h, preferred_element_type=jnp.float32)
        return lam * h + (1.0 - lam) * h_perm

    # conv1 -> relu -> mixup
    # TODO(synk): F.dropout(p=0.4, training=True) is stochastic; treated as
    # identity (inference semantics) here.
    h1 = mixup(jnp.maximum(graph_conv(x, w1_ref, b1_ref), 0.0), p1_ref)
    # conv2 -> relu -> mixup
    h2 = mixup(jnp.maximum(graph_conv(h1, w2_ref, b2_ref), 0.0), p2_ref)
    # layer 3 reuses conv2's weights (the reference module never calls conv3).
    # Its mixup is skipped: sum-pooling is invariant to intra-graph permutation.
    h3 = jnp.maximum(graph_conv(h2, w2_ref, b2_ref), 0.0)

    # SumAggregation over the graph's valid rows (masked reduction) -> (1, Hp)
    pooled = jnp.sum(h3 * msk_ref[0], axis=0, keepdims=True)

    # Linear head + log_softmax (padded class lanes masked out).
    logits = (jnp.dot(pooled.astype(mm_dtype), wl_ref[...],
                      preferred_element_type=jnp.float32) + bl_ref[...])
    lane = jax.lax.broadcasted_iota(jnp.int32, logits.shape, 1)
    logits = jnp.where(lane < c_out, logits, -1e30)
    m = jnp.max(logits, axis=-1, keepdims=True)
    lse = m + jnp.log(jnp.sum(jnp.exp(logits - m), axis=-1, keepdims=True))
    out_ref[0] = logits - lse


# ----------------------------------------------------------------------------
# Host-side packing (plain numpy glue, done once per batch).
# ----------------------------------------------------------------------------
def _pack_graphs(x0, src, dst, perm1, perm2, ptr, mm_dtype):
    """Per-graph padded blocks: features, adjacency, local perms, row mask."""
    x0 = np.asarray(x0, np.float32)
    src = np.asarray(src)
    dst = np.asarray(dst)
    perm1 = np.asarray(perm1)
    perm2 = np.asarray(perm2)
    ptr_np = np.asarray(list(ptr), np.int64)
    G = len(ptr_np) - 1
    c_in = x0.shape[1]

    sizes = [int(ptr_np[g + 1] - ptr_np[g]) for g in range(G)]
    n_max = _round_up(max(sizes), NODE_ALIGN)
    cin_p = _round_up(c_in, LANE)

    xp = np.zeros((G, n_max, cin_p), np.float32)
    ap = np.zeros((G, n_max, n_max), np.float32)
    p1 = np.tile(np.arange(n_max, dtype=np.int32)[None, :, None], (G, 1, 1))
    p2 = p1.copy()
    mask = np.zeros((G, n_max, 1), np.float32)

    for g in range(G):
        s, e = int(ptr_np[g]), int(ptr_np[g + 1])
        ng = e - s
        xp[g, :ng, :c_in] = x0[s:e]
        p1[g, :ng, 0] = perm1[s:e] - s
        p2[g, :ng, 0] = perm2[s:e] - s
        mask[g, :ng, 0] = 1.0

    # Adjacency blocks from the edge list; A[g, i, j] = #edges j->i (intra-graph,
    # standard PyG batching: no cross-graph edges).
    gidx = np.searchsorted(ptr_np, dst, side="right") - 1
    for u, v, g in zip(src, dst, gidx):
        ap[g, v - ptr_np[g], u - ptr_np[g]] += 1.0

    # Pre-cast the matmul operands (features, adjacency) to the MXU dtype on the
    # host: identical rounding to an in-kernel cast, half the per-graph DMA.
    return (jnp.asarray(xp, dtype=mm_dtype), jnp.asarray(ap, dtype=mm_dtype),
            jnp.asarray(p1), jnp.asarray(p2), jnp.asarray(mask), n_max, cin_p)


def _pack_params(params, c_in, hidden, c_out, mm_dtype):
    """Pad channel dims to 128 lanes, stack [W_root; W_nbr], pre-cast to bf16."""
    cin_p = _round_up(c_in, LANE)
    hp = _round_up(hidden, LANE)
    cp = _round_up(c_out, LANE)

    w1 = np.zeros((2 * cin_p, hp), np.float32)
    w1[:c_in, :hidden] = np.asarray(params["w1r"])
    w1[cin_p:cin_p + c_in, :hidden] = np.asarray(params["w1n"])
    b1 = np.zeros((1, hp), np.float32)
    b1[0, :hidden] = np.asarray(params["b1"]).reshape(-1)

    w2 = np.zeros((2 * hp, hp), np.float32)
    w2[:hidden, :hidden] = np.asarray(params["w2r"])
    w2[hp:hp + hidden, :hidden] = np.asarray(params["w2n"])
    b2 = np.zeros((1, hp), np.float32)
    b2[0, :hidden] = np.asarray(params["b2"]).reshape(-1)

    wl = np.zeros((hp, cp), np.float32)
    wl[:hidden, :c_out] = np.asarray(params["wl"])
    bl = np.zeros((1, cp), np.float32)
    bl[0, :c_out] = np.asarray(params["bl"]).reshape(-1)

    # Weights in the MXU dtype (resident in VMEM once), biases in f32.
    return dict(w1=jnp.asarray(w1, dtype=mm_dtype), b1=jnp.asarray(b1),
                w2=jnp.asarray(w2, dtype=mm_dtype), b2=jnp.asarray(b2),
                wl=jnp.asarray(wl, dtype=mm_dtype), bl=jnp.asarray(bl))


# ----------------------------------------------------------------------------
# Wrapper.
# ----------------------------------------------------------------------------
def net_forward(x0, src, dst, perm1, perm2, ptr, lam, params,
                matmul_dtype=jnp.bfloat16):
    c_in = x0.shape[1]
    hidden = params["w1r"].shape[1]
    c_out = params["wl"].shape[1]

    xp, ap, p1, p2, mask, n_max, cin_p = _pack_graphs(
        x0, src, dst, perm1, perm2, ptr, matmul_dtype)
    pk = _pack_params(params, c_in, hidden, c_out, matmul_dtype)
    G = xp.shape[0]
    hp = pk["w1"].shape[1]
    cp = pk["wl"].shape[1]

    lam_arr = jnp.asarray([[lam]], dtype=jnp.float32)

    def per_graph(shape2):           # streamed per-graph block
        return pl.BlockSpec((1,) + shape2, lambda g: (g, 0, 0))

    def resident(shape2):            # full-array block, constant index -> resident
        return pl.BlockSpec(shape2, lambda g: (0, 0))

    kernel = functools.partial(net_kernel, c_out=c_out, mm_dtype=matmul_dtype)

    out = pl.pallas_call(
        kernel,
        out_shape=jax.ShapeDtypeStruct((G, 1, cp), jnp.float32),
        grid=(G,),
        in_specs=[
            pl.BlockSpec((1, 1), lambda g: (0, 0),
                         memory_space=pltpu.MemorySpace.SMEM),   # lam
            per_graph((n_max, cin_p)),                           # node features
            per_graph((n_max, n_max)),                           # adjacency block
            per_graph((n_max, 1)),                               # perm layer 1
            per_graph((n_max, 1)),                               # perm layer 2
            per_graph((n_max, 1)),                               # valid-row mask
            resident((2 * cin_p, hp)),                           # W1 [root; nbr]
            resident((1, hp)),                                   # b1
            resident((2 * hp, hp)),                              # W2 [root; nbr]
            resident((1, hp)),                                   # b2
            resident((hp, cp)),                                  # W_lin
            resident((1, cp)),                                   # b_lin
        ],
        out_specs=pl.BlockSpec((1, 1, cp), lambda g: (g, 0, 0)),
        compiler_params=pltpu.CompilerParams(
            dimension_semantics=("parallel",),        # megacore split on v7x
            vmem_limit_bytes=32 * 1024 * 1024),
    )(lam_arr, xp, ap, p1, p2, mask,
      pk["w1"], pk["b1"], pk["w2"], pk["b2"], pk["wl"], pk["bl"])

    return out[:, 0, :c_out]


# ----------------------------------------------------------------------------
# Pure-JAX reference with the same MXU precision policy (bf16 matmul operands,
# f32 accumulation, f32 elementwise).  Full module semantics incl. mixup #3.
# ----------------------------------------------------------------------------
def reference(x0, A, perm1, perm2, perm3, ptr, lam, params,
              matmul_dtype=jnp.bfloat16):
    mm = matmul_dtype

    def dot(a, b):
        return jnp.dot(a.astype(mm), b.astype(mm),
                       preferred_element_type=jnp.float32)

    def conv(h, wr, wn, b):
        agg = jnp.dot(A.astype(mm), h.astype(mm),
                      preferred_element_type=jnp.float32)
        return dot(h, wr) + dot(agg, wn) + b

    def mix(h, perm):
        return lam * h + (1.0 - lam) * h[perm]

    h1 = mix(jnp.maximum(conv(x0, params["w1r"], params["w1n"], params["b1"]), 0.0), perm1)
    h2 = mix(jnp.maximum(conv(h1, params["w2r"], params["w2n"], params["b2"]), 0.0), perm2)
    h3 = mix(jnp.maximum(conv(h2, params["w2r"], params["w2n"], params["b2"]), 0.0), perm3)
    pooled = jnp.stack([h3[s:e].sum(axis=0) for s, e in zip(ptr[:-1], ptr[1:])])
    logits = dot(pooled, params["wl"]) + params["bl"]
    return jax.nn.log_softmax(logits, axis=-1)


# ----------------------------------------------------------------------------
# Demo / self-test.
# ----------------------------------------------------------------------------
if __name__ == "__main__":
    # 16 nodes in 2 graphs of 8, 8 input channels, 32 hidden, 4 classes.
    N, C_in, H, C_out = 16, 8, 32, 4
    ptr = [0, 8, 16]
    G = len(ptr) - 1
    lam = 0.7

    key = jax.random.PRNGKey(0)
    keys = iter(jax.random.split(key, 20))

    x0 = jax.random.normal(next(keys), (N, C_in), jnp.float32)

    # Random intra-graph edges (16 per graph).
    E_per = 16
    src_l, dst_l = [], []
    for s, e in zip(ptr[:-1], ptr[1:]):
        src_l.append(jax.random.randint(next(keys), (E_per,), s, e))
        dst_l.append(jax.random.randint(next(keys), (E_per,), s, e))
    src = jnp.concatenate(src_l)
    dst = jnp.concatenate(dst_l)
    A = jnp.zeros((N, N), jnp.float32).at[dst, src].add(1.0)  # reference only

    # Deterministic per-layer, per-segment MixUp permutations (global indices).
    def make_perm(k):
        parts = []
        for s, e in zip(ptr[:-1], ptr[1:]):
            k, sub = jax.random.split(k)
            parts.append(jax.random.permutation(sub, jnp.arange(s, e)))
        return jnp.concatenate(parts).astype(jnp.int32), k

    pk = next(keys)
    perm1, pk = make_perm(pk)
    perm2, pk = make_perm(pk)
    perm3, pk = make_perm(pk)

    def init(kk, shape, scale=0.1):
        return scale * jax.random.normal(kk, shape, jnp.float32)

    params = {
        "w1r": init(next(keys), (C_in, H)),
        "w1n": init(next(keys), (C_in, H)),
        "b1":  init(next(keys), (1, H)),
        "w2r": init(next(keys), (H, H)),
        "w2n": init(next(keys), (H, H)),
        "b2":  init(next(keys), (1, H)),
        "wl":  init(next(keys), (H, C_out)),
        "bl":  init(next(keys), (1, C_out)),
    }

    out = net_forward(x0, src, dst, perm1, perm2, ptr, lam, params)
    out = jax.block_until_ready(out)

    ref = reference(x0, A, perm1, perm2, perm3, ptr, lam, params)
    assert out.shape == (G, C_out)
    max_diff = float(jnp.max(jnp.abs(out - ref)))
    assert jnp.allclose(out, ref, atol=1e-3, rtol=1e-3), \
        f"mismatch vs JAX reference (max abs diff {max_diff})"

    print("KERNEL_OK")
</pallas_src>

<mosaic_0001>
module attributes {stable_mosaic.version = 11 : i64} {
  func.func @net_kernel(%arg0: i32, %arg1: memref<1x1xf32, #tpu.memory_space<smem>>, %arg2: memref<1x16x128xbf16, #tpu.memory_space<vmem>>, %arg3: memref<1x16x16xbf16, #tpu.memory_space<vmem>>, %arg4: memref<1x16x1xi32, #tpu.memory_space<vmem>>, %arg5: memref<1x16x1xi32, #tpu.memory_space<vmem>>, %arg6: memref<1x16x1xf32, #tpu.memory_space<vmem>>, %arg7: memref<256x128xbf16, #tpu.memory_space<vmem>>, %arg8: memref<1x128xf32, #tpu.memory_space<vmem>>, %arg9: memref<256x128xbf16, #tpu.memory_space<vmem>>, %arg10: memref<1x128xf32, #tpu.memory_space<vmem>>, %arg11: memref<128x128xbf16, #tpu.memory_space<vmem>>, %arg12: memref<1x128xf32, #tpu.memory_space<vmem>>, %arg13: memref<1x1x128xf32, #tpu.memory_space<vmem>>) attributes {dimension_semantics = [#tpu.dimension_semantics<parallel>], iteration_bounds = array<i64: 2>, scalar_prefetch = 0 : i64, scratch_operands = 0 : i64, tpu.core_type = #tpu.core_type<tc>, window_params = [{transform_indices = @transform_0, window_bounds = array<i64: 1, 1>}, {transform_indices = @transform_1, window_bounds = array<i64: 1, 16, 128>}, {transform_indices = @transform_2, window_bounds = array<i64: 1, 16, 16>}, {transform_indices = @transform_3, window_bounds = array<i64: 1, 16, 1>}, {transform_indices = @transform_4, window_bounds = array<i64: 1, 16, 1>}, {transform_indices = @transform_5, window_bounds = array<i64: 1, 16, 1>}, {pipeline_mode = #tpu.pipeline_mode<synchronous>, transform_indices = @transform_6, window_bounds = array<i64: 256, 128>}, {pipeline_mode = #tpu.pipeline_mode<synchronous>, transform_indices = @transform_7, window_bounds = array<i64: 1, 128>}, {pipeline_mode = #tpu.pipeline_mode<synchronous>, transform_indices = @transform_8, window_bounds = array<i64: 256, 128>}, {pipeline_mode = #tpu.pipeline_mode<synchronous>, transform_indices = @transform_9, window_bounds = array<i64: 1, 128>}, {pipeline_mode = #tpu.pipeline_mode<synchronous>, transform_indices = @transform_10, window_bounds = array<i64: 128, 128>}, {pipeline_mode = #tpu.pipeline_mode<synchronous>, transform_indices = @transform_11, window_bounds = array<i64: 1, 128>}, {transform_indices = @transform_12, window_bounds = array<i64: 1, 1, 128>}]} {
    %c0 = arith.constant 0 : index
    %c0_0 = arith.constant 0 : index
    %0 = memref.load %arg1[%c0, %c0_0] : memref<1x1xf32, #tpu.memory_space<smem>>
    %c0_1 = arith.constant 0 : index
    %c0_2 = arith.constant 0 : index
    %c0_3 = arith.constant 0 : index
    %1 = vector.load %arg2[%c0_1, %c0_2, %c0_3] : memref<1x16x128xbf16, #tpu.memory_space<vmem>>, vector<1x16x128xbf16>
    %2 = vector.shape_cast %1 : vector<1x16x128xbf16> to vector<16x128xbf16>
    %c0_4 = arith.constant 0 : index
    %c0_5 = arith.constant 0 : index
    %c0_6 = arith.constant 0 : index
    %3 = vector.load %arg3[%c0_4, %c0_5, %c0_6] : memref<1x16x16xbf16, #tpu.memory_space<vmem>>, vector<1x16x16xbf16>
    %4 = vector.shape_cast %3 : vector<1x16x16xbf16> to vector<16x16xbf16>
    %5 = tpu.iota {dimensions = array<i32: 1>} : vector<16x16xi32>
    %cst = arith.constant dense<0.000000e+00> : vector<16x128xf32>
    %6 = tpu.matmul %4, %2, %cst {dimension_numbers = #tpu.dot_dimension_numbers<[1], [0], [0], [1], [0, 0, 1, 1], [], []>} : vector<16x16xbf16>, vector<16x128xbf16>, vector<16x128xf32> -> vector<16x128xf32>
    %7 = arith.truncf %6 : vector<16x128xf32> to vector<16x128xbf16>
    %8 = tpu.concatenate %2, %7 in 1 : vector<16x128xbf16>, vector<16x128xbf16> -> vector<16x256xbf16>
    %c0_7 = arith.constant 0 : index
    %c0_8 = arith.constant 0 : index
    %9 = vector.load %arg7[%c0_7, %c0_8] : memref<256x128xbf16, #tpu.memory_space<vmem>>, vector<256x128xbf16>
    %cst_9 = arith.constant dense<0.000000e+00> : vector<16x128xf32>
    %10 = tpu.matmul %8, %9, %cst_9 {dimension_numbers = #tpu.dot_dimension_numbers<[1], [0], [0], [1], [0, 0, 1, 1], [], []>} : vector<16x256xbf16>, vector<256x128xbf16>, vector<16x128xf32> -> vector<16x128xf32>
    %c0_10 = arith.constant 0 : index
    %c0_11 = arith.constant 0 : index
    %11 = vector.load %arg8[%c0_10, %c0_11] : memref<1x128xf32, #tpu.memory_space<vmem>>, vector<1x128xf32>
    %12 = vector.broadcast %11 : vector<1x128xf32> to vector<16x128xf32>
    %13 = arith.addf %10, %12 : vector<16x128xf32>
    %cst_12 = arith.constant 0.000000e+00 : f32
    %14 = vector.broadcast %cst_12 : f32 to vector<16x128xf32>
    %15 = arith.maximumf %13, %14 : vector<16x128xf32>
    %c0_13 = arith.constant 0 : index
    %c0_14 = arith.constant 0 : index
    %c0_15 = arith.constant 0 : index
    %16 = vector.load %arg4[%c0_13, %c0_14, %c0_15] : memref<1x16x1xi32, #tpu.memory_space<vmem>>, vector<1x16x1xi32>
    %17 = vector.shape_cast %16 : vector<1x16x1xi32> to vector<16x1xi32>
    %18 = vector.broadcast %17 : vector<16x1xi32> to vector<16x16xi32>
    %19 = arith.cmpi eq, %5, %18 : vector<16x16xi32>
    %cst_16 = arith.constant 1.000000e+00 : f32
    %cst_17 = arith.constant 0.000000e+00 : f32
    %20 = vector.broadcast %cst_16 : f32 to vector<16x16xf32>
    %21 = vector.broadcast %cst_17 : f32 to vector<16x16xf32>
    %22 = arith.select %19, %20, %21 : vector<16x16xi1>, vector<16x16xf32>
    %cst_18 = arith.constant dense<0.000000e+00> : vector<16x128xf32>
    %23 = tpu.matmul %22, %15, %cst_18 {dimension_numbers = #tpu.dot_dimension_numbers<[1], [0], [0], [1], [0, 0, 1, 1], [], []>} : vector<16x16xf32>, vector<16x128xf32>, vector<16x128xf32> -> vector<16x128xf32>
    %24 = vector.broadcast %0 : f32 to vector<16x128xf32>
    %25 = arith.mulf %24, %15 : vector<16x128xf32>
    %cst_19 = arith.constant 1.000000e+00 : f32
    %26 = arith.subf %cst_19, %0 : f32
    %27 = vector.broadcast %26 : f32 to vector<16x128xf32>
    %28 = arith.mulf %27, %23 : vector<16x128xf32>
    %29 = arith.addf %25, %28 : vector<16x128xf32>
    %30 = arith.truncf %29 : vector<16x128xf32> to vector<16x128xbf16>
    %cst_20 = arith.constant dense<0.000000e+00> : vector<16x128xf32>
    %31 = tpu.matmul %4, %30, %cst_20 {dimension_numbers = #tpu.dot_dimension_numbers<[1], [0], [0], [1], [0, 0, 1, 1], [], []>} : vector<16x16xbf16>, vector<16x128xbf16>, vector<16x128xf32> -> vector<16x128xf32>
    %32 = arith.truncf %31 : vector<16x128xf32> to vector<16x128xbf16>
    %33 = tpu.concatenate %30, %32 in 1 : vector<16x128xbf16>, vector<16x128xbf16> -> vector<16x256xbf16>
    %c0_21 = arith.constant 0 : index
    %c0_22 = arith.constant 0 : index
    %34 = vector.load %arg9[%c0_21, %c0_22] : memref<256x128xbf16, #tpu.memory_space<vmem>>, vector<256x128xbf16>
    %cst_23 = arith.constant dense<0.000000e+00> : vector<16x128xf32>
    %35 = tpu.matmul %33, %34, %cst_23 {dimension_numbers = #tpu.dot_dimension_numbers<[1], [0], [0], [1], [0, 0, 1, 1], [], []>} : vector<16x256xbf16>, vector<256x128xbf16>, vector<16x128xf32> -> vector<16x128xf32>
    %c0_24 = arith.constant 0 : index
    %c0_25 = arith.constant 0 : index
    %36 = vector.load %arg10[%c0_24, %c0_25] : memref<1x128xf32, #tpu.memory_space<vmem>>, vector<1x128xf32>
    %37 = vector.broadcast %36 : vector<1x128xf32> to vector<16x128xf32>
    %38 = arith.addf %35, %37 : vector<16x128xf32>
    %cst_26 = arith.constant 0.000000e+00 : f32
    %39 = vector.broadcast %cst_26 : f32 to vector<16x128xf32>
    %40 = arith.maximumf %38, %39 : vector<16x128xf32>
    %c0_27 = arith.constant 0 : index
    %c0_28 = arith.constant 0 : index
    %c0_29 = arith.constant 0 : index
    %41 = vector.load %arg5[%c0_27, %c0_28, %c0_29] : memref<1x16x1xi32, #tpu.memory_space<vmem>>, vector<1x16x1xi32>
    %42 = vector.shape_cast %41 : vector<1x16x1xi32> to vector<16x1xi32>
    %43 = vector.broadcast %42 : vector<16x1xi32> to vector<16x16xi32>
    %44 = arith.cmpi eq, %5, %43 : vector<16x16xi32>
    %cst_30 = arith.constant 1.000000e+00 : f32
    %cst_31 = arith.constant 0.000000e+00 : f32
    %45 = vector.broadcast %cst_30 : f32 to vector<16x16xf32>
    %46 = vector.broadcast %cst_31 : f32 to vector<16x16xf32>
    %47 = arith.select %44, %45, %46 : vector<16x16xi1>, vector<16x16xf32>
    %cst_32 = arith.constant dense<0.000000e+00> : vector<16x128xf32>
    %48 = tpu.matmul %47, %40, %cst_32 {dimension_numbers = #tpu.dot_dimension_numbers<[1], [0], [0], [1], [0, 0, 1, 1], [], []>} : vector<16x16xf32>, vector<16x128xf32>, vector<16x128xf32> -> vector<16x128xf32>
    %49 = vector.broadcast %0 : f32 to vector<16x128xf32>
    %50 = arith.mulf %49, %40 : vector<16x128xf32>
    %cst_33 = arith.constant 1.000000e+00 : f32
    %51 = arith.subf %cst_33, %0 : f32
    %52 = vector.broadcast %51 : f32 to vector<16x128xf32>
    %53 = arith.mulf %52, %48 : vector<16x128xf32>
    %54 = arith.addf %50, %53 : vector<16x128xf32>
    %55 = arith.truncf %54 : vector<16x128xf32> to vector<16x128xbf16>
    %cst_34 = arith.constant dense<0.000000e+00> : vector<16x128xf32>
    %56 = tpu.matmul %4, %55, %cst_34 {dimension_numbers = #tpu.dot_dimension_numbers<[1], [0], [0], [1], [0, 0, 1, 1], [], []>} : vector<16x16xbf16>, vector<16x128xbf16>, vector<16x128xf32> -> vector<16x128xf32>
    %57 = arith.truncf %56 : vector<16x128xf32> to vector<16x128xbf16>
    %58 = tpu.concatenate %55, %57 in 1 : vector<16x128xbf16>, vector<16x128xbf16> -> vector<16x256xbf16>
    %c0_35 = arith.constant 0 : index
    %c0_36 = arith.constant 0 : index
    %59 = vector.load %arg9[%c0_35, %c0_36] : memref<256x128xbf16, #tpu.memory_space<vmem>>, vector<256x128xbf16>
    %cst_37 = arith.constant dense<0.000000e+00> : vector<16x128xf32>
    %60 = tpu.matmul %58, %59, %cst_37 {dimension_numbers = #tpu.dot_dimension_numbers<[1], [0], [0], [1], [0, 0, 1, 1], [], []>} : vector<16x256xbf16>, vector<256x128xbf16>, vector<16x128xf32> -> vector<16x128xf32>
    %c0_38 = arith.constant 0 : index
    %c0_39 = arith.constant 0 : index
    %61 = vector.load %arg10[%c0_38, %c0_39] : memref<1x128xf32, #tpu.memory_space<vmem>>, vector<1x128xf32>
    %62 = vector.broadcast %61 : vector<1x128xf32> to vector<16x128xf32>
    %63 = arith.addf %60, %62 : vector<16x128xf32>
    %cst_40 = arith.constant 0.000000e+00 : f32
    %64 = vector.broadcast %cst_40 : f32 to vector<16x128xf32>
    %65 = arith.maximumf %63, %64 : vector<16x128xf32>
    %c0_41 = arith.constant 0 : index
    %c0_42 = arith.constant 0 : index
    %c0_43 = arith.constant 0 : index
    %66 = vector.load %arg6[%c0_41, %c0_42, %c0_43] : memref<1x16x1xf32, #tpu.memory_space<vmem>>, vector<1x16x1xf32>
    %67 = vector.shape_cast %66 : vector<1x16x1xf32> to vector<16x1xf32>
    %68 = vector.broadcast %67 : vector<16x1xf32> to vector<16x128xf32>
    %69 = arith.mulf %65, %68 : vector<16x128xf32>
    %cst_44 = arith.constant dense<0.000000e+00> : vector<128xf32>
    %70 = vector.multi_reduction <add>, %69, %cst_44 [0] : vector<16x128xf32> to vector<128xf32>
    %71 = vector.shape_cast %70 : vector<128xf32> to vector<1x128xf32>
    %72 = arith.truncf %71 : vector<1x128xf32> to vector<1x128xbf16>
    %c0_45 = arith.constant 0 : index
    %c0_46 = arith.constant 0 : index
    %73 = vector.load %arg11[%c0_45, %c0_46] : memref<128x128xbf16, #tpu.memory_space<vmem>>, vector<128x128xbf16>
    %cst_47 = arith.constant dense<0.000000e+00> : vector<1x128xf32>
    %74 = tpu.matmul %72, %73, %cst_47 {dimension_numbers = #tpu.dot_dimension_numbers<[1], [0], [0], [1], [0, 0, 1, 1], [], []>} : vector<1x128xbf16>, vector<128x128xbf16>, vector<1x128xf32> -> vector<1x128xf32>
    %c0_48 = arith.constant 0 : index
    %c0_49 = arith.constant 0 : index
    %75 = vector.load %arg12[%c0_48, %c0_49] : memref<1x128xf32, #tpu.memory_space<vmem>>, vector<1x128xf32>
    %76 = arith.addf %74, %75 : vector<1x128xf32>
    %77 = tpu.iota {dimensions = array<i32: 1>} : vector<1x128xi32>
    %c4_i32 = arith.constant 4 : i32
    %78 = vector.broadcast %c4_i32 : i32 to vector<1x128xi32>
    %79 = arith.cmpi slt, %77, %78 : vector<1x128xi32>
    %cst_50 = arith.constant -1.000000e+30 : f32
    %80 = vector.broadcast %cst_50 : f32 to vector<1x128xf32>
    %81 = arith.select %79, %76, %80 : vector<1x128xi1>, vector<1x128xf32>
    %cst_51 = arith.constant dense<0xFF800000> : vector<1xf32>
    %82 = vector.multi_reduction <maximumf>, %81, %cst_51 [1] : vector<1x128xf32> to vector<1xf32>
    %83 = vector.shape_cast %82 : vector<1xf32> to vector<1x1xf32>
    %84 = vector.broadcast %83 : vector<1x1xf32> to vector<1x128xf32>
    %85 = arith.subf %81, %84 : vector<1x128xf32>
    %86 = math.exp %85 : vector<1x128xf32>
    %cst_52 = arith.constant dense<0.000000e+00> : vector<1xf32>
    %87 = vector.multi_reduction <add>, %86, %cst_52 [1] : vector<1x128xf32> to vector<1xf32>
    %88 = vector.shape_cast %87 : vector<1xf32> to vector<1x1xf32>
    %89 = math.log %88 : vector<1x1xf32>
    %90 = arith.addf %83, %89 : vector<1x1xf32>
    %91 = vector.broadcast %90 : vector<1x1xf32> to vector<1x128xf32>
    %92 = arith.subf %81, %91 : vector<1x128xf32>
    %c0_53 = arith.constant 0 : index
    %c0_54 = arith.constant 0 : index
    %c0_55 = arith.constant 0 : index
    %93 = vector.load %arg13[%c0_53, %c0_54, %c0_55] : memref<1x1x128xf32, #tpu.memory_space<vmem>>, vector<1x1x128xf32>
    %94 = vector.shape_cast %93 : vector<1x1x128xf32> to vector<1x128xf32>
    %95 = vector.shape_cast %92 : vector<1x128xf32> to vector<1x1x128xf32>
    tpu.vector_store %arg13[%c0_53, %c0_54, %c0_55], %95 {strides = array<i32>} : memref<1x1x128xf32, #tpu.memory_space<vmem>>, vector<1x1x128xf32>,
    return
  }
  func.func @transform_0(%arg0: i32) -> (i32, i32) {
    %c0_i32 = arith.constant 0 : i32
    %c0_i32_0 = arith.constant 0 : i32
    %c0_i32_1 = arith.constant 0 : i32
    return %c0_i32, %c0_i32_0 : i32, i32
  }
  func.func @transform_1(%arg0: i32) -> (i32, i32, i32) {
    %c0_i32 = arith.constant 0 : i32
    %c0_i32_0 = arith.constant 0 : i32
    %c0_i32_1 = arith.constant 0 : i32
    return %arg0, %c0_i32, %c0_i32_0 : i32, i32, i32
  }
  func.func @transform_2(%arg0: i32) -> (i32, i32, i32) {
    %c0_i32 = arith.constant 0 : i32
    %c0_i32_0 = arith.constant 0 : i32
    %c0_i32_1 = arith.constant 0 : i32
    return %arg0, %c0_i32, %c0_i32_0 : i32, i32, i32
  }
  func.func @transform_3(%arg0: i32) -> (i32, i32, i32) {
    %c0_i32 = arith.constant 0 : i32
    %c0_i32_0 = arith.constant 0 : i32
    %c0_i32_1 = arith.constant 0 : i32
    return %arg0, %c0_i32, %c0_i32_0 : i32, i32, i32
  }
  func.func @transform_4(%arg0: i32) -> (i32, i32, i32) {
    %c0_i32 = arith.constant 0 : i32
    %c0_i32_0 = arith.constant 0 : i32
    %c0_i32_1 = arith.constant 0 : i32
    return %arg0, %c0_i32, %c0_i32_0 : i32, i32, i32
  }
  func.func @transform_5(%arg0: i32) -> (i32, i32, i32) {
    %c0_i32 = arith.constant 0 : i32
    %c0_i32_0 = arith.constant 0 : i32
    %c0_i32_1 = arith.constant 0 : i32
    return %arg0, %c0_i32, %c0_i32_0 : i32, i32, i32
  }
  func.func @transform_6(%arg0: i32) -> (i32, i32) {
    %c0_i32 = arith.constant 0 : i32
    %c0_i32_0 = arith.constant 0 : i32
    %c0_i32_1 = arith.constant 0 : i32
    return %c0_i32, %c0_i32_0 : i32, i32
  }
  func.func @transform_7(%arg0: i32) -> (i32, i32) {
    %c0_i32 = arith.constant 0 : i32
    %c0_i32_0 = arith.constant 0 : i32
    %c0_i32_1 = arith.constant 0 : i32
    return %c0_i32, %c0_i32_0 : i32, i32
  }
  func.func @transform_8(%arg0: i32) -> (i32, i32) {
    %c0_i32 = arith.constant 0 : i32
    %c0_i32_0 = arith.constant 0 : i32
    %c0_i32_1 = arith.constant 0 : i32
    return %c0_i32, %c0_i32_0 : i32, i32
  }
  func.func @transform_9(%arg0: i32) -> (i32, i32) {
    %c0_i32 = arith.constant 0 : i32
    %c0_i32_0 = arith.constant 0 : i32
    %c0_i32_1 = arith.constant 0 : i32
    return %c0_i32, %c0_i32_0 : i32, i32
  }
  func.func @transform_10(%arg0: i32) -> (i32, i32) {
    %c0_i32 = arith.constant 0 : i32
    %c0_i32_0 = arith.constant 0 : i32
    %c0_i32_1 = arith.constant 0 : i32
    return %c0_i32, %c0_i32_0 : i32, i32
  }
  func.func @transform_11(%arg0: i32) -> (i32, i32) {
    %c0_i32 = arith.constant 0 : i32
    %c0_i32_0 = arith.constant 0 : i32
    %c0_i32_1 = arith.constant 0 : i32
    return %c0_i32, %c0_i32_0 : i32, i32
  }
  func.func @transform_12(%arg0: i32) -> (i32, i32, i32) {
    %c0_i32 = arith.constant 0 : i32
    %c0_i32_0 = arith.constant 0 : i32
    %c0_i32_1 = arith.constant 0 : i32
    return %arg0, %c0_i32, %c0_i32_0 : i32, i32, i32
  }
}

</mosaic_0001>

<llo_original>
// kernel: tpu_custom_call.1
$region0: #{tpu_custom_call.1}
  #allocation0 [shape = 'u32[]', space=smem, size = 0x4, offset = 0x4, fixed_abs, tag = 'smem constant byte address 0x4 - core index']
  #allocation1 [shape = 'u32[144,128]{1,0:T(1,128)}', space=vmem, size = 0x12000, scoped, tag = 'internal scratch']
  #allocation2 [shape = 'f32[1,1]{1,0:T(1,128)S(6)}', space=smem, size = 0x200, scoped, tag = 'scoped memory for tpu_custom_call.1']
  %s0 = inlined_call_operand.<no memory space> [shape: f32[1,1], index: 0, kind: input, shape index: {}]
  %s1 = inlined_call_operand.hbm [shape: bf16[2,16,128], index: 1, kind: input, shape index: {}]
  %s2 = inlined_call_operand.hbm [shape: bf16[2,16,16], index: 2, kind: input, shape index: {}]
  %s3 = inlined_call_operand.vmem [shape: s32[2,16,1], index: 3, kind: input, shape index: {}]
  %s4 = inlined_call_operand.vmem [shape: s32[2,16,1], index: 4, kind: input, shape index: {}]
  %s5 = inlined_call_operand.vmem [shape: f32[2,16,1], index: 5, kind: input, shape index: {}]
  %s6 = inlined_call_operand.hbm [shape: bf16[256,128], index: 6, kind: input, shape index: {}]
  %s7 = inlined_call_operand.vmem [shape: f32[1,128], index: 7, kind: input, shape index: {}]
  %s8 = inlined_call_operand.vmem [shape: bf16[256,128], index: 8, kind: input, shape index: {}]
  %s9 = inlined_call_operand.vmem [shape: f32[1,128], index: 9, kind: input, shape index: {}]
  %s10 = inlined_call_operand.hbm [shape: bf16[128,128], index: 10, kind: input, shape index: {}]
  %s11 = inlined_call_operand.vmem [shape: f32[1,128], index: 11, kind: input, shape index: {}]
  %s12 = inlined_call_operand.hbm [shape: f32[2,1,128], index: 12, kind: output, shape index: {}]
  %s13 = sld [smem:[#allocation0]]
  $region97: #{tpu_custom_call.1} parent=0
    _
  %s15 = ssub.s32 1, %s13
  %s16 = scalar_select 0, %s15, %s13
  %17 = sst [smem:[#allocation2]] %s0
  $region1: #{tpu_custom_call.1} parent=0
    #allocation3 [shape = 'u8[8192]{0}', space=vmem, size = 0x2000, scoped, tag = 'input window, operand 1']
    #allocation4 [shape = 's32[2]{0}', space=sflag, size = 0x8, scoped, tag = 'scoped memory for tpu_custom_call.1']
    #allocation5 [shape = 's32[2]{0}', space=sflag, size = 0x8, scoped, tag = 'scoped memory for tpu_custom_call.1']
    #allocation6 [shape = 'u8[8192]{0}', space=vmem, size = 0x2000, scoped, tag = 'input window, operand 2']
    #allocation7 [shape = 's32[2]{0}', space=sflag, size = 0x8, scoped, tag = 'scoped memory for tpu_custom_call.1']
    #allocation8 [shape = 'u8[65536]{0}', space=vmem, size = 0x10000, scoped, tag = 'input window, operand 6, single buffered']
    #allocation9 [shape = 'u8[32768]{0}', space=vmem, size = 0x8000, scoped, tag = 'input window, operand 10, single buffered']
    #allocation10 [shape = 's32[1]{0}', space=sflag, size = 0x4, scoped, tag = 'scoped memory for tpu_custom_call.1']
    #allocation11 [shape = 'u8[1024]{0}', space=vmem, size = 0x400, scoped, tag = 'output window, operand 0']
    %18 = vsyncpa [#allocation4], 0
    %s19 = scalar_lea.sflag [#allocation4], 1
    %20 = vsyncpa %s19, 0
    %21 = vsyncpa [#allocation7], 0
    %s22 = scalar_lea.sflag [#allocation7], 1
    %23 = vsyncpa %s22, 0
    %24 = vsyncpa [#allocation10], 0
    %25 = vsyncpa [#allocation5], 0
    %s26 = scalar_lea.sflag [#allocation5], 1
    %27 = vsyncpa %s26, 0
    loop: start=0, step=1, limit=4
    $region2: #{tpu_custom_call.1} parent=1 // loop_pre_header
      _
    $region3: #{tpu_custom_call.1} parent=1 // loop_header
      %s29 = sphi 0, %s33
      %p30 = scmp.ge.s32.totalorder %s29, 4
      %s37 = sphi 0, %s37
      %s39 = sphi 0, %s37
      %s40 = sphi 0, %s39
      %s54 = sphi 0, %s40
      %s60 = sphi 0, %s62
      %s63 = sphi 0, %s60
      %s64 = sphi 0, %s63
      %s80 = sphi 0, %s64
      %s86 = sphi 0, %s88
      %s89 = sphi 0, %s86
      %s90 = sphi 0, %s89
      %s106 = sphi 0, %s90
      %s112 = sphi 0, %s114
      %s115 = sphi 0, %s112
      %s116 = sphi 0, %s115
      %s132 = sphi 0, %s116
      %s138 = sphi 0, %s140
      %s141 = sphi 0, %s138
      %s142 = sphi 0, %s141
      %s158 = sphi 0, %s142
      %s164 = sphi 0, %s166
      %s167 = sphi 0, %s164
      %s168 = sphi 0, %s167
      %s184 = sphi 0, %s168
      %s188 = sphi 0, %s188
      %s190 = sphi 0, %s188
      %s191 = sphi 0, %s190
      %s205 = sphi 0, %s191
      %s209 = sphi 0, %s209
      %s211 = sphi 0, %s209
      %s212 = sphi 0, %s211
      %s226 = sphi 0, %s212
      %s230 = sphi 0, %s230
      %s232 = sphi 0, %s230
      %s233 = sphi 0, %s232
      %s247 = sphi 0, %s233
      %s251 = sphi 0, %s251
      %s253 = sphi 0, %s251
      %s254 = sphi 0, %s253
      %s268 = sphi 0, %s254
      %s272 = sphi 0, %s272
      %s274 = sphi 0, %s272
      %s275 = sphi 0, %s274
      %s289 = sphi 0, %s275
      %s293 = sphi 0, %s293
      %s295 = sphi 0, %s293
      %s296 = sphi 0, %s295
      %s310 = sphi 0, %s296
      %s316 = sphi 0, %s318
      %s319 = sphi 0, %s316
      %s320 = sphi 0, %s319
      %s336 = sphi 0, %s320
    $region4: #{tpu_custom_call.1} parent=1 // loop_header_branch
      %32 = sbr.rel (%p30) target = $region8
    $region5: #{tpu_custom_call.1} parent=1 // loop_body
      %s34 = ssub.s32 %s29, 1
      %s35 = ssub.s32 %s29, 2
      %s36 = sadd.s32 %s29, 1
      %s38 = sadd.s32 %s37, 1
      %p41 = scmp.eq.s32.totalorder %s29, 1
      %p42 = scmp.ne.s32.totalorder %s37, %s39
      %p43 = scmp.eq.s32.totalorder %s29, 0
      %p44 = por %p42, %p43
      %p45 = scmp.ne.s32.totalorder %s37, %s39
      %p46 = scmp.eq.s32.totalorder %s34, 1
      %p47 = por %p45, %p46
      %p48 = scmp.ne.s32.totalorder %s39, %s40
      %p49 = scmp.eq.s32.totalorder %s34, 0
      %p50 = por %p48, %p49
      %p51 = scmp.ne.s32.totalorder %s39, %s40
      %p52 = scmp.eq.s32.totalorder %s35, 1
      %p53 = por %p51, %p52
      %p55 = scmp.ne.s32.totalorder %s40, %s54
      %p56 = scmp.eq.s32.totalorder %s35, 0
      %p57 = por %p55, %p56
      %s58 = ssub.s32 %s29, %s36
      %p59 = scmp.eq.s32.totalorder %s58, 0
      %s61 = sadd.s32 %s60, 1
      %s62 = scalar_select %p59, %s60, %s61
      %p65 = pneg %p59
      %p66 = scmp.eq.s32.totalorder %s29, 1
      %p67 = por %p65, %p66
      %p68 = scmp.ne.s32.totalorder %s60, %s63
      %p69 = scmp.eq.s32.totalorder %s29, 0
      %p70 = por %p68, %p69
      %p71 = scmp.ne.s32.totalorder %s60, %s63
      %p72 = scmp.eq.s32.totalorder %s34, 1
      %p73 = por %p71, %p72
      %p74 = scmp.ne.s32.totalorder %s63, %s64
      %p75 = scmp.eq.s32.totalorder %s34, 0
      %p76 = por %p74, %p75
      %p77 = scmp.ne.s32.totalorder %s63, %s64
      %p78 = scmp.eq.s32.totalorder %s35, 1
      %p79 = por %p77, %p78
      %p81 = scmp.ne.s32.totalorder %s64, %s80
      %p82 = scmp.eq.s32.totalorder %s35, 0
      %p83 = por %p81, %p82
      %s84 = ssub.s32 %s29, %s36
      %p85 = scmp.eq.s32.totalorder %s84, 0
      %s87 = sadd.s32 %s86, 1
      %s88 = scalar_select %p85, %s86, %s87
      %p91 = pneg %p85
      %p92 = scmp.eq.s32.totalorder %s29, 1
      %p93 = por %p91, %p92
      %p94 = scmp.ne.s32.totalorder %s86, %s89
      %p95 = scmp.eq.s32.totalorder %s29, 0
      %p96 = por %p94, %p95
      %p97 = scmp.ne.s32.totalorder %s86, %s89
      %p98 = scmp.eq.s32.totalorder %s34, 1
      %p99 = por %p97, %p98
      %p100 = scmp.ne.s32.totalorder %s89, %s90
      %p101 = scmp.eq.s32.totalorder %s34, 0
      %p102 = por %p100, %p101
      %p103 = scmp.ne.s32.totalorder %s89, %s90
      %p104 = scmp.eq.s32.totalorder %s35, 1
      %p105 = por %p103, %p104
      %p107 = scmp.ne.s32.totalorder %s90, %s106
      %p108 = scmp.eq.s32.totalorder %s35, 0
      %p109 = por %p107, %p108
      %s110 = ssub.s32 %s29, %s36
      %p111 = scmp.eq.s32.totalorder %s110, 0
      %s113 = sadd.s32 %s112, 1
      %s114 = scalar_select %p111, %s112, %s113
      %p117 = pneg %p111
      %p118 = scmp.eq.s32.totalorder %s29, 1
      %p119 = por %p117, %p118
      %p120 = scmp.ne.s32.totalorder %s112, %s115
      %p121 = scmp.eq.s32.totalorder %s29, 0
      %p122 = por %p120, %p121
      %p123 = scmp.ne.s32.totalorder %s112, %s115
      %p124 = scmp.eq.s32.totalorder %s34, 1
      %p125 = por %p123, %p124
      %p126 = scmp.ne.s32.totalorder %s115, %s116
      %p127 = scmp.eq.s32.totalorder %s34, 0
      %p128 = por %p126, %p127
      %p129 = scmp.ne.s32.totalorder %s115, %s116
      %p130 = scmp.eq.s32.totalorder %s35, 1
      %p131 = por %p129, %p130
      %p133 = scmp.ne.s32.totalorder %s116, %s132
      %p134 = scmp.eq.s32.totalorder %s35, 0
      %p135 = por %p133, %p134
      %s136 = ssub.s32 %s29, %s36
      %p137 = scmp.eq.s32.totalorder %s136, 0
      %s139 = sadd.s32 %s138, 1
      %s140 = scalar_select %p137, %s138, %s139
      %p143 = pneg %p137
      %p144 = scmp.eq.s32.totalorder %s29, 1
      %p145 = por %p143, %p144
      %p146 = scmp.ne.s32.totalorder %s138, %s141
      %p147 = scmp.eq.s32.totalorder %s29, 0
      %p148 = por %p146, %p147
      %p149 = scmp.ne.s32.totalorder %s138, %s141
      %p150 = scmp.eq.s32.totalorder %s34, 1
      %p151 = por %p149, %p150
      %p152 = scmp.ne.s32.totalorder %s141, %s142
      %p153 = scmp.eq.s32.totalorder %s34, 0
      %p154 = por %p152, %p153
      %p155 = scmp.ne.s32.totalorder %s141, %s142
      %p156 = scmp.eq.s32.totalorder %s35, 1
      %p157 = por %p155, %p156
      %p159 = scmp.ne.s32.totalorder %s142, %s158
      %p160 = scmp.eq.s32.totalorder %s35, 0
      %p161 = por %p159, %p160
      %s162 = ssub.s32 %s29, %s36
      %p163 = scmp.eq.s32.totalorder %s162, 0
      %s165 = sadd.s32 %s164, 1
      %s166 = scalar_select %p163, %s164, %s165
      %p169 = pneg %p163
      %p170 = scmp.eq.s32.totalorder %s29, 1
      %p171 = por %p169, %p170
      %p172 = scmp.ne.s32.totalorder %s164, %s167
      %p173 = scmp.eq.s32.totalorder %s29, 0
      %p174 = por %p172, %p173
      %p175 = scmp.ne.s32.totalorder %s164, %s167
      %p176 = scmp.eq.s32.totalorder %s34, 1
      %p177 = por %p175, %p176
      %p178 = scmp.ne.s32.totalorder %s167, %s168
      %p179 = scmp.eq.s32.totalorder %s34, 0
      %p180 = por %p178, %p179
      %p181 = scmp.ne.s32.totalorder %s167, %s168
      %p182 = scmp.eq.s32.totalorder %s35, 1
      %p183 = por %p181, %p182
      %p185 = scmp.ne.s32.totalorder %s168, %s184
      %p186 = scmp.eq.s32.totalorder %s35, 0
      %p187 = por %p185, %p186
      %s189 = sadd.s32 %s188, 1
      %p192 = scmp.eq.s32.totalorder %s29, 1
      %p193 = scmp.ne.s32.totalorder %s188, %s190
      %p194 = scmp.eq.s32.totalorder %s29, 0
      %p195 = por %p193, %p194
      %p196 = scmp.ne.s32.totalorder %s188, %s190
      %p197 = scmp.eq.s32.totalorder %s34, 1
      %p198 = por %p196, %p197
      %p199 = scmp.ne.s32.totalorder %s190, %s191
      %p200 = scmp.eq.s32.totalorder %s34, 0
      %p201 = por %p199, %p200
      %p202 = scmp.ne.s32.totalorder %s190, %s191
      %p203 = scmp.eq.s32.totalorder %s35, 1
      %p204 = por %p202, %p203
      %p206 = scmp.ne.s32.totalorder %s191, %s205
      %p207 = scmp.eq.s32.totalorder %s35, 0
      %p208 = por %p206, %p207
      %s210 = sadd.s32 %s209, 1
      %p213 = scmp.eq.s32.totalorder %s29, 1
      %p214 = scmp.ne.s32.totalorder %s209, %s211
      %p215 = scmp.eq.s32.totalorder %s29, 0
      %p216 = por %p214, %p215
      %p217 = scmp.ne.s32.totalorder %s209, %s211
      %p218 = scmp.eq.s32.totalorder %s34, 1
      %p219 = por %p217, %p218
      %p220 = scmp.ne.s32.totalorder %s211, %s212
      %p221 = scmp.eq.s32.totalorder %s34, 0
      %p222 = por %p220, %p221
      %p223 = scmp.ne.s32.totalorder %s211, %s212
      %p224 = scmp.eq.s32.totalorder %s35, 1
      %p225 = por %p223, %p224
      %p227 = scmp.ne.s32.totalorder %s212, %s226
      %p228 = scmp.eq.s32.totalorder %s35, 0
      %p229 = por %p227, %p228
      %s231 = sadd.s32 %s230, 1
      %p234 = scmp.eq.s32.totalorder %s29, 1
      %p235 = scmp.ne.s32.totalorder %s230, %s232
      %p236 = scmp.eq.s32.totalorder %s29, 0
      %p237 = por %p235, %p236
      %p238 = scmp.ne.s32.totalorder %s230, %s232
      %p239 = scmp.eq.s32.totalorder %s34, 1
      %p240 = por %p238, %p239
      %p241 = scmp.ne.s32.totalorder %s232, %s233
      %p242 = scmp.eq.s32.totalorder %s34, 0
      %p243 = por %p241, %p242
      %p244 = scmp.ne.s32.totalorder %s232, %s233
      %p245 = scmp.eq.s32.totalorder %s35, 1
      %p246 = por %p244, %p245
      %p248 = scmp.ne.s32.totalorder %s233, %s247
      %p249 = scmp.eq.s32.totalorder %s35, 0
      %p250 = por %p248, %p249
      %s252 = sadd.s32 %s251, 1
      %p255 = scmp.eq.s32.totalorder %s29, 1
      %p256 = scmp.ne.s32.totalorder %s251, %s253
      %p257 = scmp.eq.s32.totalorder %s29, 0
      %p258 = por %p256, %p257
      %p259 = scmp.ne.s32.totalorder %s251, %s253
      %p260 = scmp.eq.s32.totalorder %s34, 1
      %p261 = por %p259, %p260
      %p262 = scmp.ne.s32.totalorder %s253, %s254
      %p263 = scmp.eq.s32.totalorder %s34, 0
      %p264 = por %p262, %p263
      %p265 = scmp.ne.s32.totalorder %s253, %s254
      %p266 = scmp.eq.s32.totalorder %s35, 1
      %p267 = por %p265, %p266
      %p269 = scmp.ne.s32.totalorder %s254, %s268
      %p270 = scmp.eq.s32.totalorder %s35, 0
      %p271 = por %p269, %p270
      %s273 = sadd.s32 %s272, 1
      %p276 = scmp.eq.s32.totalorder %s29, 1
      %p277 = scmp.ne.s32.totalorder %s272, %s274
      %p278 = scmp.eq.s32.totalorder %s29, 0
      %p279 = por %p277, %p278
      %p280 = scmp.ne.s32.totalorder %s272, %s274
      %p281 = scmp.eq.s32.totalorder %s34, 1
      %p282 = por %p280, %p281
      %p283 = scmp.ne.s32.totalorder %s274, %s275
      %p284 = scmp.eq.s32.totalorder %s34, 0
      %p285 = por %p283, %p284
      %p286 = scmp.ne.s32.totalorder %s274, %s275
      %p287 = scmp.eq.s32.totalorder %s35, 1
      %p288 = por %p286, %p287
      %p290 = scmp.ne.s32.totalorder %s275, %s289
      %p291 = scmp.eq.s32.totalorder %s35, 0
      %p292 = por %p290, %p291
      %s294 = sadd.s32 %s293, 1
      %p297 = scmp.eq.s32.totalorder %s29, 1
      %p298 = scmp.ne.s32.totalorder %s293, %s295
      %p299 = scmp.eq.s32.totalorder %s29, 0
      %p300 = por %p298, %p299
      %p301 = scmp.ne.s32.totalorder %s293, %s295
      %p302 = scmp.eq.s32.totalorder %s34, 1
      %p303 = por %p301, %p302
      %p304 = scmp.ne.s32.totalorder %s295, %s296
      %p305 = scmp.eq.s32.totalorder %s34, 0
      %p306 = por %p304, %p305
      %p307 = scmp.ne.s32.totalorder %s295, %s296
      %p308 = scmp.eq.s32.totalorder %s35, 1
      %p309 = por %p307, %p308
      %p311 = scmp.ne.s32.totalorder %s296, %s310
      %p312 = scmp.eq.s32.totalorder %s35, 0
      %p313 = por %p311, %p312
      %s314 = ssub.s32 %s29, %s36
      %p315 = scmp.eq.s32.totalorder %s314, 0
      %s317 = sadd.s32 %s316, 1
      %s318 = scalar_select %p315, %s316, %s317
      %p321 = pneg %p315
      %p322 = scmp.eq.s32.totalorder %s29, 1
      %p323 = por %p321, %p322
      %p324 = scmp.ne.s32.totalorder %s316, %s319
      %p325 = scmp.eq.s32.totalorder %s29, 0
      %p326 = por %p324, %p325
      %p327 = scmp.ne.s32.totalorder %s316, %s319
      %p328 = scmp.eq.s32.totalorder %s34, 1
      %p329 = por %p327, %p328
      %p330 = scmp.ne.s32.totalorder %s319, %s320
      %p331 = scmp.eq.s32.totalorder %s34, 0
      %p332 = por %p330, %p331
      %p333 = scmp.ne.s32.totalorder %s319, %s320
      %p334 = scmp.eq.s32.totalorder %s35, 1
      %p335 = por %p333, %p334
      %p337 = scmp.ne.s32.totalorder %s320, %s336
      %p338 = scmp.eq.s32.totalorder %s35, 0
      %p339 = por %p337, %p338
      %p340 = scmp.le.s32.totalorder 1, %s29
      %p341 = scmp.lt.s32.totalorder %s29, 3
      %p342 = pnand %p340, %p341
      %p343 = pneg %p342
      // Predicated region
      $region9: #{tpu_custom_call.1} parent=5 // pred_check
        _
      $region10: #{tpu_custom_call.1} parent=5 // pred_check_branch
        %345 = sbr.rel (%p342) target = $region12
      $region11: #{tpu_custom_call.1} parent=5 // pred_region
        %s346 = ssub.s32 %s29, 1
        // Predicated region
        $region13: #{tpu_custom_call.1} parent=11 // pred_check
          %p347 = pneg %p50
        $region14: #{tpu_custom_call.1} parent=11 // pred_check_branch
          %349 = sbr.rel (%p347) target = $region16
        $region15: #{tpu_custom_call.1} parent=11 // pred_region
          _
        $region16: #{tpu_custom_call.1} parent=11 // pred_fallthru
          _
        // Predicated region
        $region17: #{tpu_custom_call.1} parent=11 // pred_check
          %p350 = pneg %p201
        $region18: #{tpu_custom_call.1} parent=11 // pred_check_branch
          %352 = sbr.rel (%p350) target = $region20
        $region19: #{tpu_custom_call.1} parent=11 // pred_region
          %s354 = ssub.s32 2048, 2048
          %355 = vsyncadd [#allocation7], %s354
          %s356 = sshll.u32 [#allocation8], 4
          %s357 = int_to_ptr.vmem [resolvable:$true] %s356
          %362 = dma.hbm_to_vmem [thread:$0]  %s6, 2048, %s357, [#allocation7], 64, 64, 4
        $region20: #{tpu_custom_call.1} parent=11 // pred_fallthru
          _
        // Predicated region
        $region21: #{tpu_custom_call.1} parent=11 // pred_check
          %p363 = pneg %p222
        $region22: #{tpu_custom_call.1} parent=11 // pred_check_branch
          %365 = sbr.rel (%p363) target = $region24
        $region23: #{tpu_custom_call.1} parent=11 // pred_region
          _
        $region24: #{tpu_custom_call.1} parent=11 // pred_fallthru
          _
        // Predicated region
        $region25: #{tpu_custom_call.1} parent=11 // pred_check
          %p366 = pneg %p243
        $region26: #{tpu_custom_call.1} parent=11 // pred_check_branch
          %368 = sbr.rel (%p366) target = $region28
        $region27: #{tpu_custom_call.1} parent=11 // pred_region
          _
        $region28: #{tpu_custom_call.1} parent=11 // pred_fallthru
          _
        // Predicated region
        $region29: #{tpu_custom_call.1} parent=11 // pred_check
          %p369 = pneg %p264
        $region30: #{tpu_custom_call.1} parent=11 // pred_check_branch
          %371 = sbr.rel (%p369) target = $region32
        $region31: #{tpu_custom_call.1} parent=11 // pred_region
          _
        $region32: #{tpu_custom_call.1} parent=11 // pred_fallthru
          _
        // Predicated region
        $region33: #{tpu_custom_call.1} parent=11 // pred_check
          %p372 = pneg %p285
        $region34: #{tpu_custom_call.1} parent=11 // pred_check_branch
          %374 = sbr.rel (%p372) target = $region36
        $region35: #{tpu_custom_call.1} parent=11 // pred_region
          %s376 = ssub.s32 1024, 1024
          %377 = vsyncadd [#allocation10], %s376
          %s378 = sshll.u32 [#allocation9], 4
          %s379 = int_to_ptr.vmem [resolvable:$true] %s378
          %384 = dma.hbm_to_vmem [thread:$0]  %s10, 1024, %s379, [#allocation10], 64, 64, 4
        $region36: #{tpu_custom_call.1} parent=11 // pred_fallthru
          _
        // Predicated region
        $region37: #{tpu_custom_call.1} parent=11 // pred_check
          %p385 = pneg %p306
        $region38: #{tpu_custom_call.1} parent=11 // pred_check_branch
          %387 = sbr.rel (%p385) target = $region40
        $region39: #{tpu_custom_call.1} parent=11 // pred_region
          _
        $region40: #{tpu_custom_call.1} parent=11 // pred_fallthru
          _
      $region12: #{tpu_custom_call.1} parent=5 // pred_fallthru
        _
      %p388 = scmp.lt.s32.totalorder %s29, 2
      // Predicated region
      $region41: #{tpu_custom_call.1} parent=5 // pred_check
        %p389 = pneg %p388
      $region42: #{tpu_custom_call.1} parent=5 // pred_check_branch
        %391 = sbr.rel (%p389) target = $region44
      $region43: #{tpu_custom_call.1} parent=5 // pred_region
        // Predicated region
        $region45: #{tpu_custom_call.1} parent=43 // pred_check
          %p392 = pneg %p70
        $region46: #{tpu_custom_call.1} parent=43 // pred_check_branch
          %394 = sbr.rel (%p392) target = $region48
        $region47: #{tpu_custom_call.1} parent=43 // pred_region
          %s395 = sand.u32 %s60, 1
          %s396 = scalar_lea.sflag [#allocation4], %s395
          %s397 = sand.u32 %s60, 1
          %s398 = smul.addr %s397, 8
          %s399 = scalar_lea.vmem [#allocation3], %s398
          %s401 = ssub.s32 128, 128
          %402 = vsyncadd %s396, %s401
          %s403 = smul.addr %s29, 2
          %s404 = smul.addr %s403, 64
          %s405 = scalar_lea.hbm %s1, %s404
          %s406 = sshll.u32 %s399, 4
          %s407 = int_to_ptr.vmem [resolvable:$true] %s406
          %412 = dma.hbm_to_vmem [thread:$0]  %s405, 128, %s407, %s396, 64, 64, 4
        $region48: #{tpu_custom_call.1} parent=43 // pred_fallthru
          _
        // Predicated region
        $region49: #{tpu_custom_call.1} parent=43 // pred_check
          %p413 = pneg %p96
        $region50: #{tpu_custom_call.1} parent=43 // pred_check_branch
          %415 = sbr.rel (%p413) target = $region52
        $region51: #{tpu_custom_call.1} parent=43 // pred_region
          %s416 = sand.u32 %s29, 1
          %s417 = scalar_lea.sflag [#allocation7], %s416
          %s418 = sand.u32 %s86, 1
          %s419 = smul.addr %s418, 8
          %s420 = scalar_lea.vmem [#allocation6], %s419
          %s422 = ssub.s32 128, 128
          %423 = vsyncadd %s417, %s422
          %s424 = smul.addr %s29, 2
          %s425 = smul.addr %s424, 64
          %s426 = scalar_lea.hbm %s2, %s425
          %s427 = sshll.u32 %s420, 4
          %s428 = int_to_ptr.vmem [resolvable:$true] %s427
          %433 = dma.hbm_to_vmem [thread:$0]  %s426, 128, %s428, %s417, 64, 64, 4
        $region52: #{tpu_custom_call.1} parent=43 // pred_fallthru
          _
        // Predicated region
        $region53: #{tpu_custom_call.1} parent=43 // pred_check
          %p434 = pneg %p122
        $region54: #{tpu_custom_call.1} parent=43 // pred_check_branch
          %436 = sbr.rel (%p434) target = $region56
        $region55: #{tpu_custom_call.1} parent=43 // pred_region
          %p437 = scmp.lt.s32.totalorder %s29, 1
          %s438 = scalar_select %p437, %s29, 1
          %s439 = smul.addr %s438, 2
          %s440 = smul.addr %s439, 8
          %s441 = scalar_lea.vmem %s3, %s440
        $region56: #{tpu_custom_call.1} parent=43 // pred_fallthru
          _
        // Predicated region
        $region57: #{tpu_custom_call.1} parent=43 // pred_check
          %p442 = pneg %p148
        $region58: #{tpu_custom_call.1} parent=43 // pred_check_branch
          %444 = sbr.rel (%p442) target = $region60
        $region59: #{tpu_custom_call.1} parent=43 // pred_region
          %p445 = scmp.lt.s32.totalorder %s29, 1
          %s446 = scalar_select %p445, %s29, 1
          %s447 = smul.addr %s446, 2
          %s448 = smul.addr %s447, 8
          %s449 = scalar_lea.vmem %s4, %s448
        $region60: #{tpu_custom_call.1} parent=43 // pred_fallthru
          _
        // Predicated region
        $region61: #{tpu_custom_call.1} parent=43 // pred_check
          %p450 = pneg %p174
        $region62: #{tpu_custom_call.1} parent=43 // pred_check_branch
          %452 = sbr.rel (%p450) target = $region64
        $region63: #{tpu_custom_call.1} parent=43 // pred_region
          %p453 = scmp.lt.s32.totalorder %s29, 1
          %s454 = scalar_select %p453, %s29, 1
          %s455 = smul.addr %s454, 2
          %s456 = smul.addr %s455, 8
          %s457 = scalar_lea.vmem %s5, %s456
        $region64: #{tpu_custom_call.1} parent=43 // pred_fallthru
          _
      $region44: #{tpu_custom_call.1} parent=5 // pred_fallthru
        _
      %p458 = scmp.le.s32.totalorder 1, %s29
      %p459 = scmp.lt.s32.totalorder %s29, 3
      %p460 = pnand %p458, %p459
      %p461 = pneg %p460
      // Predicated region
      $region65: #{tpu_custom_call.1} parent=5 // pred_check
        _
      $region66: #{tpu_custom_call.1} parent=5 // pred_check_branch
        %463 = sbr.rel (%p460) target = $region68
      $region67: #{tpu_custom_call.1} parent=5 // pred_region
        %s464 = ssub.s32 %s29, 1
        %s465 = sand.u32 %s63, 1
        %s466 = scalar_lea.sflag [#allocation4], %s465
        %s467 = sand.u32 %s63, 1
        %s468 = smul.addr %s467, 8
        %s469 = scalar_lea.vmem [#allocation3], %s468
        // Predicated region
        $region69: #{tpu_custom_call.1} parent=67 // pred_check
          %p470 = pneg %p76
        $region70: #{tpu_custom_call.1} parent=67 // pred_check_branch
          %472 = sbr.rel (%p470) target = $region72
        $region71: #{tpu_custom_call.1} parent=67 // pred_region
          %473 = dma.done %s466, 128
        $region72: #{tpu_custom_call.1} parent=67 // pred_fallthru
          _
        %s474 = sand.u32 %s34, 1
        %s475 = scalar_lea.sflag [#allocation7], %s474
        %s476 = sand.u32 %s89, 1
        %s477 = smul.addr %s476, 8
        %s478 = scalar_lea.vmem [#allocation6], %s477
        // Predicated region
        $region73: #{tpu_custom_call.1} parent=67 // pred_check
          %p479 = pneg %p102
        $region74: #{tpu_custom_call.1} parent=67 // pred_check_branch
          %481 = sbr.rel (%p479) target = $region76
        $region75: #{tpu_custom_call.1} parent=67 // pred_region
          %482 = dma.done %s475, 128
        $region76: #{tpu_custom_call.1} parent=67 // pred_fallthru
          _
        // Predicated region
        $region77: #{tpu_custom_call.1} parent=67 // pred_check
          %p483 = pneg %p201
        $region78: #{tpu_custom_call.1} parent=67 // pred_check_branch
          %485 = sbr.rel (%p483) target = $region80
        $region79: #{tpu_custom_call.1} parent=67 // pred_region
          %486 = dma.done [#allocation7], 2048
        $region80: #{tpu_custom_call.1} parent=67 // pred_fallthru
          _
        // Predicated region
        $region81: #{tpu_custom_call.1} parent=67 // pred_check
          %p487 = pneg %p285
        $region82: #{tpu_custom_call.1} parent=67 // pred_check_branch
          %489 = sbr.rel (%p487) target = $region84
        $region83: #{tpu_custom_call.1} parent=67 // pred_region
          %490 = dma.done [#allocation10], 1024
        $region84: #{tpu_custom_call.1} parent=67 // pred_fallthru
          _
        %p491 = pneg %p50
        %p492 = pneg %p47
        %s493 = sand.u32 %s63, 1
        %s494 = scalar_lea.sflag [#allocation4], %s493
        %s495 = sand.u32 %s63, 1
        %s496 = smul.addr %s495, 8
        %s497 = scalar_lea.vmem [#allocation3], %s496
        %p498 = pneg %p76
        %p499 = pneg %p73
        %s500 = sand.u32 %s34, 1
        %s501 = scalar_lea.sflag [#allocation7], %s500
        %s502 = sand.u32 %s89, 1
        %s503 = smul.addr %s502, 8
        %s504 = scalar_lea.vmem [#allocation6], %s503
        %p505 = pneg %p102
        %p506 = pneg %p99
        %p507 = scmp.lt.s32.totalorder %s34, 1
        %s508 = scalar_select %p507, %s34, 1
        %s509 = smul.addr %s508, 2
        %s510 = smul.addr %s509, 8
        %s511 = scalar_lea.vmem %s3, %s510
        %p512 = pneg %p128
        %p513 = pneg %p125
        %p514 = scmp.lt.s32.totalorder %s34, 1
        %s515 = scalar_select %p514, %s34, 1
        %s516 = smul.addr %s515, 2
        %s517 = smul.addr %s516, 8
        %s518 = scalar_lea.vmem %s4, %s517
        %p519 = pneg %p154
        %p520 = pneg %p151
        %p521 = scmp.lt.s32.totalorder %s34, 1
        %s522 = scalar_select %p521, %s34, 1
        %s523 = smul.addr %s522, 2
        %s524 = smul.addr %s523, 8
        %s525 = scalar_lea.vmem %s5, %s524
        %p526 = pneg %p180
        %p527 = pneg %p177
        %p528 = pneg %p201
        %p529 = pneg %p198
        %p530 = pneg %p222
        %p531 = pneg %p219
        %p532 = pneg %p243
        %p533 = pneg %p240
        %p534 = pneg %p264
        %p535 = pneg %p261
        %p536 = pneg %p285
        %p537 = pneg %p282
        %p538 = pneg %p306
        %p539 = pneg %p303
        %p540 = pneg %p332
        %p541 = pneg %p329
        %s542 = sand.u32 %s319, 1
        %s543 = scalar_lea.sflag [#allocation5], %s542
        %s544 = sand.u32 %s319, 1
        %s545 = scalar_lea.vmem [#allocation11], %s544
        %p546 = scmp.lt.s32.totalorder %s34, 1
        %s547 = scalar_select %p546, %s34, 1
        %s548 = smul.addr %s547, 2
        %s549 = smul.addr %s548, 8
        %s550 = scalar_lea.vmem %s3, %s549
        %p551 = scmp.lt.s32.totalorder %s34, 1
        %s552 = scalar_select %p551, %s34, 1
        %s553 = smul.addr %s552, 2
        %s554 = smul.addr %s553, 8
        %s555 = scalar_lea.vmem %s4, %s554
        %p556 = scmp.lt.s32.totalorder %s34, 1
        %s557 = scalar_select %p556, %s34, 1
        %s558 = smul.addr %s557, 2
        %s559 = smul.addr %s558, 8
        %s560 = scalar_lea.vmem %s5, %s559
        %s562 = sld [smem:[#allocation2]]
        %v563 = vld [vmem:[%s469] sm:$0xf]
        %v564 = vld [vmem:[%s469 + $0x4] sm:$0xf]
        %v565 = vld [vmem:[%s478] sm:$0xf]
        %v566 = vld [vmem:[%s478 + $0x4] sm:$0xf]
        %v567 = vlaneseq
        %v568 = vand.u32 %v567, 127
        %v571 = vunpack.c.l.b16 %v565
        %v572 = vunpack.c.l.b16 %v566
        %v573 = vpack.c.b16 %v572, %v571
        %v576 = vunpack.c.l.b16 %v563
        %v577 = vunpack.c.l.b16 %v564
        %v578 = vpack.c.b16 %v577, %v576
        %vm580 = vcmask 130048
        %v582 = vsel %vm580, %v573, 0
        %584 = vmatprep.subr.bf16.mxu0 0
        %585 = vmatpush1.bf16.msra.mxu0 %v578
        %586 = vmatprep.subr.bf16.mxu0 0
        %587 = vmatpush1.bf16.msra.mxu0 0
        %588 = vmatprep.subr.bf16.mxu0 0
        %589 = vmatpush1.bf16.msra.mxu0 0
        %590 = vmatprep.subr.bf16.mxu0 0
        %591 = vmatpush1.bf16.msra.mxu0 0
        %592 = vmatprep.subr.bf16.mxu0 0
        %593 = vmatpush1.bf16.msra.mxu0 0
        %594 = vmatprep.subr.bf16.mxu0 0
        %595 = vmatpush1.bf16.msra.mxu0 0
        %596 = vmatprep.subr.bf16.mxu0 0
        %597 = vmatpush1.bf16.msra.mxu0 0
        %598 = vmatprep.subr.bf16.mxu0 0
        %599 = vmatpush1.bf16.msra.mxu0 0
        %600 = vmatprep.subr.bf16.mxu0 0
        %601 = vmatpush1.bf16.msra.mxu0 0
        %602 = vmatprep.subr.bf16.mxu0 0
        %603 = vmatpush1.bf16.msra.mxu0 0
        %604 = vmatprep.subr.bf16.mxu0 0
        %605 = vmatpush1.bf16.msra.mxu0 0
        %606 = vmatprep.subr.bf16.mxu0 0
        %607 = vmatpush1.bf16.msra.mxu0 0
        %608 = vmatprep.subr.bf16.mxu0 0
        %609 = vmatpush1.bf16.msra.mxu0 0
        %610 = vmatprep.subr.bf16.mxu0 0
        %611 = vmatpush1.bf16.msra.mxu0 0
        %612 = vmatprep.subr.bf16.mxu0 0
        %613 = vmatpush1.bf16.msra.mxu0 0
        %614 = vmatprep.subr.bf16.mxu0 0
        %615 = vmatpush1.bf16.msra.mxu0 0
        %616 = vmatprep.mubr.bf16.mxu0 0
        %617 = vmatmul.mubr.bf16.gmra.mrb[0].mxu0 %v582
        %v618 = vpop.f32.mrb[0].mxu0
        %v619 = vadd.f32 0.0, %v618
        %v620 = vpop.f32.mrb[0].mxu0
        %v621 = vpop.f32.mrb[0].mxu0
        %v622 = vadd.f32 0.0, %v621
        %v623 = vpop.f32.mrb[0].mxu0
        %624 = vdwg.mxu0
        %v625 = vpack.c.bf16 %v622, %v619
        %v626 = vld [vmem:[#allocation8] sm:$0xf]
        %v627 = vld [vmem:[#allocation8 + $0x4] sm:$0xf]
        %v628 = vld [vmem:[#allocation8 + $0x8] sm:$0xf]
        %v629 = vld [vmem:[#allocation8 + $0xc] sm:$0xf]
        %v630 = vld [vmem:[#allocation8 + $0x10] sm:$0xf]
        %v631 = vld [vmem:[#allocation8 + $0x14] sm:$0xf]
        %v632 = vld [vmem:[#allocation8 + $0x18] sm:$0xf]
        %v633 = vld [vmem:[#allocation8 + $0x1c] sm:$0xf]
        %v634 = vld [vmem:[#allocation8 + $0x20] sm:$0xf]
        %v635 = vld [vmem:[#allocation8 + $0x24] sm:$0xf]
        %v636 = vld [vmem:[#allocation8 + $0x28] sm:$0xf]
        %v637 = vld [vmem:[#allocation8 + $0x2c] sm:$0xf]
        %v638 = vld [vmem:[#allocation8 + $0x30] sm:$0xf]
        %v639 = vld [vmem:[#allocation8 + $0x34] sm:$0xf]
        %v640 = vld [vmem:[#allocation8 + $0x38] sm:$0xf]
        %v641 = vld [vmem:[#allocation8 + $0x3c] sm:$0xf]
        %v642 = vld [vmem:[#allocation8 + $0x40] sm:$0xf]
        %v643 = vld [vmem:[#allocation8 + $0x44] sm:$0xf]
        %v644 = vld [vmem:[#allocation8 + $0x48] sm:$0xf]
        %v645 = vld [vmem:[#allocation8 + $0x4c] sm:$0xf]
        %v646 = vld [vmem:[#allocation8 + $0x50] sm:$0xf]
        %v647 = vld [vmem:[#allocation8 + $0x54] sm:$0xf]
        %v648 = vld [vmem:[#allocation8 + $0x58] sm:$0xf]
        %v649 = vld [vmem:[#allocation8 + $0x5c] sm:$0xf]
        %v650 = vld [vmem:[#allocation8 + $0x60] sm:$0xf]
        %v651 = vld [vmem:[#allocation8 + $0x64] sm:$0xf]
        %v652 = vld [vmem:[#allocation8 + $0x68] sm:$0xf]
        %v653 = vld [vmem:[#allocation8 + $0x6c] sm:$0xf]
        %v654 = vld [vmem:[#allocation8 + $0x70] sm:$0xf]
        %v655 = vld [vmem:[#allocation8 + $0x74] sm:$0xf]
        %v656 = vld [vmem:[#allocation8 + $0x78] sm:$0xf]
        %v657 = vld [vmem:[#allocation8 + $0x7c] sm:$0xf]
        %v658 = vld [vmem:[%s7] sm:$0x1]
        %v660 = vlaneseq
        %v661 = vshrl.u32 %v660, 7
        %v662 = vsub.s32 0, %v661
        %v663 = vrot.slane %v658, %v662
        %v697 = vunpack.c.l.b16 %v626
        %v698 = vunpack.c.l.b16 %v627
        %v699 = vunpack.c.l.b16 %v628
        %v700 = vunpack.c.l.b16 %v629
        %v701 = vunpack.c.l.b16 %v630
        %v702 = vunpack.c.l.b16 %v631
        %v703 = vunpack.c.l.b16 %v632
        %v704 = vunpack.c.l.b16 %v633
        %v705 = vunpack.c.l.b16 %v634
        %v706 = vunpack.c.l.b16 %v635
        %v707 = vunpack.c.l.b16 %v636
        %v708 = vunpack.c.l.b16 %v637
        %v709 = vunpack.c.l.b16 %v638
        %v710 = vunpack.c.l.b16 %v639
        %v711 = vunpack.c.l.b16 %v640
        %v712 = vunpack.c.l.b16 %v641
        %v713 = vunpack.c.l.b16 %v642
        %v714 = vunpack.c.l.b16 %v643
        %v715 = vunpack.c.l.b16 %v644
        %v716 = vunpack.c.l.b16 %v645
        %v717 = vunpack.c.l.b16 %v646
        %v718 = vunpack.c.l.b16 %v647
        %v719 = vunpack.c.l.b16 %v648
        %v720 = vunpack.c.l.b16 %v649
        %v721 = vunpack.c.l.b16 %v650
        %v722 = vunpack.c.l.b16 %v651
        %v723 = vunpack.c.l.b16 %v652
        %v724 = vunpack.c.l.b16 %v653
        %v725 = vunpack.c.l.b16 %v654
        %v726 = vunpack.c.l.b16 %v655
        %v727 = vunpack.c.l.b16 %v656
        %v728 = vunpack.c.l.b16 %v657
        %v729 = vpack.c.b16 %v698, %v697
        %v730 = vpack.c.b16 %v700, %v699
        %v731 = vpack.c.b16 %v702, %v701
        %v732 = vpack.c.b16 %v704, %v703
        %v733 = vpack.c.b16 %v706, %v705
        %v734 = vpack.c.b16 %v708, %v707
        %v735 = vpack.c.b16 %v710, %v709
        %v736 = vpack.c.b16 %v712, %v711
        %v737 = vpack.c.b16 %v714, %v713
        %v738 = vpack.c.b16 %v716, %v715
        %v739 = vpack.c.b16 %v718, %v717
        %v740 = vpack.c.b16 %v720, %v719
        %v741 = vpack.c.b16 %v722, %v721
        %v742 = vpack.c.b16 %v724, %v723
        %v743 = vpack.c.b16 %v726, %v725
        %v744 = vpack.c.b16 %v728, %v727
        %761 = vmatprep.subr.bf16.mxu0 0
        %762 = vmatpush1.bf16.msra.mxu0 %v729
        %763 = vmatprep.subr.bf16.mxu0 0
        %764 = vmatpush1.bf16.msra.mxu0 %v730
        %765 = vmatprep.subr.bf16.mxu0 0
        %766 = vmatpush1.bf16.msra.mxu0 %v731
        %767 = vmatprep.subr.bf16.mxu0 0
        %768 = vmatpush1.bf16.msra.mxu0 %v732
        %769 = vmatprep.subr.bf16.mxu0 0
        %770 = vmatpush1.bf16.msra.mxu0 %v733
        %771 = vmatprep.subr.bf16.mxu0 0
        %772 = vmatpush1.bf16.msra.mxu0 %v734
        %773 = vmatprep.subr.bf16.mxu0 0
        %774 = vmatpush1.bf16.msra.mxu0 %v735
        %775 = vmatprep.subr.bf16.mxu0 0
        %776 = vmatpush1.bf16.msra.mxu0 %v736
        %777 = vmatprep.subr.bf16.mxu0 0
        %778 = vmatpush1.bf16.msra.mxu0 %v737
        %779 = vmatprep.subr.bf16.mxu0 0
        %780 = vmatpush1.bf16.msra.mxu0 %v738
        %781 = vmatprep.subr.bf16.mxu0 0
        %782 = vmatpush1.bf16.msra.mxu0 %v739
        %783 = vmatprep.subr.bf16.mxu0 0
        %784 = vmatpush1.bf16.msra.mxu0 %v740
        %785 = vmatprep.subr.bf16.mxu0 0
        %786 = vmatpush1.bf16.msra.mxu0 %v741
        %787 = vmatprep.subr.bf16.mxu0 0
        %788 = vmatpush1.bf16.msra.mxu0 %v742
        %789 = vmatprep.subr.bf16.mxu0 0
        %790 = vmatpush1.bf16.msra.mxu0 %v743
        %791 = vmatprep.subr.bf16.mxu0 0
        %792 = vmatpush1.bf16.msra.mxu0 %v744
        %793 = vmatprep.mubr.bf16.mxu0 %v625
        %794 = vmatmul.mubr.bf16.gmra.mrb[0].mxu0 %v578
        %v795 = vpop.f32.mrb[0].mxu0
        %v796 = vadd.f32 %v663, %v795
        %v797 = vpop.f32.mrb[0].mxu0
        %v798 = vpop.f32.mrb[0].mxu0
        %v799 = vadd.f32 %v663, %v798
        %v800 = vpop.f32.mrb[0].mxu0
        %801 = vdwg.mxu0
        %v802 = vmax.f32 %v796, 0.0
        %v803 = vmax.f32 %v799, 0.0
        %v804 = vld [vmem:[%s550] sm:$0xff]
        %v805 = vld [vmem:[%s550 + $0x8] sm:$0xff]
        %806 = vset.pattern.permute.xlu0 0
        %807 = vperm.xlu0 %806, %v804
        %v808 = vpop.permute.xlu0 %807
        %809 = vset.pattern.permute.xlu0 0
        %810 = vperm.xlu0 %809, %v805
        %v811 = vpop.permute.xlu0 %810
        %vm812 = vcmp.eq.s32.totalorder %v568, %v808
        %vm813 = vcmp.eq.s32.totalorder %v568, %v811
        %v814 = vsel %vm812, 1.0, 0.0
        %v815 = vsel %vm813, 1.0, 0.0
        %v817 = vsel %vm580, %v814, 0
        %v820 = vsel %vm580, %v815, 0
        %822 = vmatprep.subr.mxu0 0.0
        %823 = vmatpush1.msra.mxu0 %v802
        %824 = vmatprep.subr.mxu0 0.0
        %825 = vmatpush1.msra.mxu0 %v803
        %826 = vmatprep.subr.mxu0 0.0
        %827 = vmatpush1.msra.mxu0 0.0
        %828 = vmatprep.subr.mxu0 0.0
        %829 = vmatpush1.msra.mxu0 0.0
        %830 = vmatprep.subr.mxu0 0.0
        %831 = vmatpush1.msra.mxu0 0.0
        %832 = vmatprep.subr.mxu0 0.0
        %833 = vmatpush1.msra.mxu0 0.0
        %834 = vmatprep.subr.mxu0 0.0
        %835 = vmatpush1.msra.mxu0 0.0
        %836 = vmatprep.subr.mxu0 0.0
        %837 = vmatpush1.msra.mxu0 0.0
        %838 = vmatprep.subr.mxu0 0.0
        %839 = vmatpush1.msra.mxu0 0.0
        %840 = vmatprep.subr.mxu0 0.0
        %841 = vmatpush1.msra.mxu0 0.0
        %842 = vmatprep.subr.mxu0 0.0
        %843 = vmatpush1.msra.mxu0 0.0
        %844 = vmatprep.subr.mxu0 0.0
        %845 = vmatpush1.msra.mxu0 0.0
        %846 = vmatprep.subr.mxu0 0.0
        %847 = vmatpush1.msra.mxu0 0.0
        %848 = vmatprep.subr.mxu0 0.0
        %849 = vmatpush1.msra.mxu0 0.0
        %850 = vmatprep.subr.mxu0 0.0
        %851 = vmatpush1.msra.mxu0 0.0
        %852 = vmatprep.subr.mxu0 0.0
        %853 = vmatpush1.msra.mxu0 0.0
        %854 = vmatprep.subr.mxu0 0.0
        %855 = vmatpush1.msra.mxu0 0.0
        %856 = vmatprep.subr.mxu0 0.0
        %857 = vmatpush1.msra.mxu0 0.0
        %858 = vmatprep.subr.mxu0 0.0
        %859 = vmatpush1.msra.mxu0 0.0
        %860 = vmatprep.subr.mxu0 0.0
        %861 = vmatpush1.msra.mxu0 0.0
        %862 = vmatprep.subr.mxu0 0.0
        %863 = vmatpush1.msra.mxu0 0.0
        %864 = vmatprep.subr.mxu0 0.0
        %865 = vmatpush1.msra.mxu0 0.0
        %866 = vmatprep.subr.mxu0 0.0
        %867 = vmatpush1.msra.mxu0 0.0
        %868 = vmatprep.subr.mxu0 0.0
        %869 = vmatpush1.msra.mxu0 0.0
        %870 = vmatprep.subr.mxu0 0.0
        %871 = vmatpush1.msra.mxu0 0.0
        %872 = vmatprep.subr.mxu0 0.0
        %873 = vmatpush1.msra.mxu0 0.0
        %874 = vmatprep.subr.mxu0 0.0
        %875 = vmatpush1.msra.mxu0 0.0
        %876 = vmatprep.subr.mxu0 0.0
        %877 = vmatpush1.msra.mxu0 0.0
        %878 = vmatprep.subr.mxu0 0.0
        %879 = vmatpush1.msra.mxu0 0.0
        %880 = vmatprep.subr.mxu0 0.0
        %881 = vmatpush1.msra.mxu0 0.0
        %882 = vmatprep.subr.mxu0 0.0
        %883 = vmatpush1.msra.mxu0 0.0
        %884 = vmatprep.subr.mxu0 0.0
        %885 = vmatpush1.msra.mxu0 0.0
        %886 = vmatprep.mubr.f32.mxu0 0.0
        %887 = vmatmul.mubr.f32.gmra.mrb[0].mxu0 %v817
        %v888 = vpop.f32.mrb[0].mxu0
        %v889 = vadd.f32 0.0, %v888
        %v890 = vpop.f32.mrb[0].mxu0
        %891 = vmatprep.mubr.f32.mxu0 0.0
        %892 = vmatmul.mubr.f32.gmra.mrb[0].mxu0 %v820
        %v893 = vpop.f32.mrb[0].mxu0
        %v894 = vadd.f32 0.0, %v893
        %v895 = vpop.f32.mrb[0].mxu0
        %896 = vdwg.mxu0
        %v897 = vstv %s562
        %v898 = vmul.f32 %v897, %v802
        %v899 = vmul.f32 %v897, %v803
        %s900 = ssub.f32 1.0, %s562
        %v901 = vstv %s900
        %v902 = vmul.f32 %v901, %v889
        %v903 = vmul.f32 %v901, %v894
        %v904 = vadd.f32 %v898, %v902
        %v905 = vadd.f32 %v899, %v903
        %v906 = vpack.c.bf16 %v905, %v904
        %907 = vmatprep.subr.bf16.mxu0 0
        %908 = vmatpush1.bf16.msra.mxu0 %v906
        %909 = vmatprep.subr.bf16.mxu0 0
        %910 = vmatpush1.bf16.msra.mxu0 0
        %911 = vmatprep.subr.bf16.mxu0 0
        %912 = vmatpush1.bf16.msra.mxu0 0
        %913 = vmatprep.subr.bf16.mxu0 0
        %914 = vmatpush1.bf16.msra.mxu0 0
        %915 = vmatprep.subr.bf16.mxu0 0
        %916 = vmatpush1.bf16.msra.mxu0 0
        %917 = vmatprep.subr.bf16.mxu0 0
        %918 = vmatpush1.bf16.msra.mxu0 0
        %919 = vmatprep.subr.bf16.mxu0 0
        %920 = vmatpush1.bf16.msra.mxu0 0
        %921 = vmatprep.subr.bf16.mxu0 0
        %922 = vmatpush1.bf16.msra.mxu0 0
        %923 = vmatprep.subr.bf16.mxu0 0
        %924 = vmatpush1.bf16.msra.mxu0 0
        %925 = vmatprep.subr.bf16.mxu0 0
        %926 = vmatpush1.bf16.msra.mxu0 0
        %927 = vmatprep.subr.bf16.mxu0 0
        %928 = vmatpush1.bf16.msra.mxu0 0
        %929 = vmatprep.subr.bf16.mxu0 0
        %930 = vmatpush1.bf16.msra.mxu0 0
        %931 = vmatprep.subr.bf16.mxu0 0
        %932 = vmatpush1.bf16.msra.mxu0 0
        %933 = vmatprep.subr.bf16.mxu0 0
        %934 = vmatpush1.bf16.msra.mxu0 0
        %935 = vmatprep.subr.bf16.mxu0 0
        %936 = vmatpush1.bf16.msra.mxu0 0
        %937 = vmatprep.subr.bf16.mxu0 0
        %938 = vmatpush1.bf16.msra.mxu0 0
        %939 = vmatprep.mubr.bf16.mxu0 0
        %940 = vmatmul.mubr.bf16.gmra.mrb[0].mxu0 %v582
        %v941 = vpop.f32.mrb[0].mxu0
        %v942 = vadd.f32 0.0, %v941
        %v943 = vpop.f32.mrb[0].mxu0
        %v944 = vpop.f32.mrb[0].mxu0
        %v945 = vadd.f32 0.0, %v944
        %v946 = vpop.f32.mrb[0].mxu0
        %947 = vdwg.mxu0
        %v948 = vpack.c.bf16 %v945, %v942
        %v949 = vld [vmem:[%s8] sm:$0xf]
        %v950 = vld [vmem:[%s8 + $0x4] sm:$0xf]
        %v951 = vld [vmem:[%s8 + $0x8] sm:$0xf]
        %v952 = vld [vmem:[%s8 + $0xc] sm:$0xf]
        %v953 = vld [vmem:[%s8 + $0x10] sm:$0xf]
        %v954 = vld [vmem:[%s8 + $0x14] sm:$0xf]
        %v955 = vld [vmem:[%s8 + $0x18] sm:$0xf]
        %v956 = vld [vmem:[%s8 + $0x1c] sm:$0xf]
        %v957 = vld [vmem:[%s8 + $0x20] sm:$0xf]
        %v958 = vld [vmem:[%s8 + $0x24] sm:$0xf]
        %v959 = vld [vmem:[%s8 + $0x28] sm:$0xf]
        %v960 = vld [vmem:[%s8 + $0x2c] sm:$0xf]
        %v961 = vld [vmem:[%s8 + $0x30] sm:$0xf]
        %v962 = vld [vmem:[%s8 + $0x34] sm:$0xf]
        %v963 = vld [vmem:[%s8 + $0x38] sm:$0xf]
        %v964 = vld [vmem:[%s8 + $0x3c] sm:$0xf]
        %v965 = vld [vmem:[%s8 + $0x40] sm:$0xf]
        %v966 = vld [vmem:[%s8 + $0x44] sm:$0xf]
        %v967 = vld [vmem:[%s8 + $0x48] sm:$0xf]
        %v968 = vld [vmem:[%s8 + $0x4c] sm:$0xf]
        %v969 = vld [vmem:[%s8 + $0x50] sm:$0xf]
        %v970 = vld [vmem:[%s8 + $0x54] sm:$0xf]
        %v971 = vld [vmem:[%s8 + $0x58] sm:$0xf]
        %v972 = vld [vmem:[%s8 + $0x5c] sm:$0xf]
        %v973 = vld [vmem:[%s8 + $0x60] sm:$0xf]
        %v974 = vld [vmem:[%s8 + $0x64] sm:$0xf]
        %v975 = vld [vmem:[%s8 + $0x68] sm:$0xf]
        %v976 = vld [vmem:[%s8 + $0x6c] sm:$0xf]
        %v977 = vld [vmem:[%s8 + $0x70] sm:$0xf]
        %v978 = vld [vmem:[%s8 + $0x74] sm:$0xf]
        %v979 = vld [vmem:[%s8 + $0x78] sm:$0xf]
        %v980 = vld [vmem:[%s8 + $0x7c] sm:$0xf]
        %v981 = vld [vmem:[%s9] sm:$0x1]
        %v983 = vlaneseq
        %v984 = vshrl.u32 %v983, 7
        %v985 = vsub.s32 0, %v984
        %v986 = vrot.slane %v981, %v985
        %v1020 = vunpack.c.l.b16 %v949
        %v1021 = vunpack.c.l.b16 %v950
        %v1022 = vunpack.c.l.b16 %v951
        %v1023 = vunpack.c.l.b16 %v952
        %v1024 = vunpack.c.l.b16 %v953
        %v1025 = vunpack.c.l.b16 %v954
        %v1026 = vunpack.c.l.b16 %v955
        %v1027 = vunpack.c.l.b16 %v956
        %v1028 = vunpack.c.l.b16 %v957
        %v1029 = vunpack.c.l.b16 %v958
        %v1030 = vunpack.c.l.b16 %v959
        %v1031 = vunpack.c.l.b16 %v960
        %v1032 = vunpack.c.l.b16 %v961
        %v1033 = vunpack.c.l.b16 %v962
        %v1034 = vunpack.c.l.b16 %v963
        %v1035 = vunpack.c.l.b16 %v964
        %v1036 = vunpack.c.l.b16 %v965
        %v1037 = vunpack.c.l.b16 %v966
        %v1038 = vunpack.c.l.b16 %v967
        %v1039 = vunpack.c.l.b16 %v968
        %v1040 = vunpack.c.l.b16 %v969
        %v1041 = vunpack.c.l.b16 %v970
        %v1042 = vunpack.c.l.b16 %v971
        %v1043 = vunpack.c.l.b16 %v972
        %v1044 = vunpack.c.l.b16 %v973
        %v1045 = vunpack.c.l.b16 %v974
        %v1046 = vunpack.c.l.b16 %v975
        %v1047 = vunpack.c.l.b16 %v976
        %v1048 = vunpack.c.l.b16 %v977
        %v1049 = vunpack.c.l.b16 %v978
        %v1050 = vunpack.c.l.b16 %v979
        %v1051 = vunpack.c.l.b16 %v980
        %v1052 = vpack.c.b16 %v1021, %v1020
        %v1053 = vpack.c.b16 %v1023, %v1022
        %v1054 = vpack.c.b16 %v1025, %v1024
        %v1055 = vpack.c.b16 %v1027, %v1026
        %v1056 = vpack.c.b16 %v1029, %v1028
        %v1057 = vpack.c.b16 %v1031, %v1030
        %v1058 = vpack.c.b16 %v1033, %v1032
        %v1059 = vpack.c.b16 %v1035, %v1034
        %v1060 = vpack.c.b16 %v1037, %v1036
        %v1061 = vpack.c.b16 %v1039, %v1038
        %v1062 = vpack.c.b16 %v1041, %v1040
        %v1063 = vpack.c.b16 %v1043, %v1042
        %v1064 = vpack.c.b16 %v1045, %v1044
        %v1065 = vpack.c.b16 %v1047, %v1046
        %v1066 = vpack.c.b16 %v1049, %v1048
        %v1067 = vpack.c.b16 %v1051, %v1050
        %1084 = vmatprep.subr.bf16.mxu0 0
        %1085 = vmatpush1.bf16.msra.mxu0 %v1052
        %1086 = vmatprep.subr.bf16.mxu0 0
        %1087 = vmatpush1.bf16.msra.mxu0 %v1053
        %1088 = vmatprep.subr.bf16.mxu0 0
        %1089 = vmatpush1.bf16.msra.mxu0 %v1054
        %1090 = vmatprep.subr.bf16.mxu0 0
        %1091 = vmatpush1.bf16.msra.mxu0 %v1055
        %1092 = vmatprep.subr.bf16.mxu0 0
        %1093 = vmatpush1.bf16.msra.mxu0 %v1056
        %1094 = vmatprep.subr.bf16.mxu0 0
        %1095 = vmatpush1.bf16.msra.mxu0 %v1057
        %1096 = vmatprep.subr.bf16.mxu0 0
        %1097 = vmatpush1.bf16.msra.mxu0 %v1058
        %1098 = vmatprep.subr.bf16.mxu0 0
        %1099 = vmatpush1.bf16.msra.mxu0 %v1059
        %1100 = vmatprep.subr.bf16.mxu0 0
        %1101 = vmatpush1.bf16.msra.mxu0 %v1060
        %1102 = vmatprep.subr.bf16.mxu0 0
        %1103 = vmatpush1.bf16.msra.mxu0 %v1061
        %1104 = vmatprep.subr.bf16.mxu0 0
        %1105 = vmatpush1.bf16.msra.mxu0 %v1062
        %1106 = vmatprep.subr.bf16.mxu0 0
        %1107 = vmatpush1.bf16.msra.mxu0 %v1063
        %1108 = vmatprep.subr.bf16.mxu0 0
        %1109 = vmatpush1.bf16.msra.mxu0 %v1064
        %1110 = vmatprep.subr.bf16.mxu0 0
        %1111 = vmatpush1.bf16.msra.mxu0 %v1065
        %1112 = vmatprep.subr.bf16.mxu0 0
        %1113 = vmatpush1.bf16.msra.mxu0 %v1066
        %1114 = vmatprep.subr.bf16.mxu0 0
        %1115 = vmatpush1.bf16.msra.mxu0 %v1067
        %1116 = vmatprep.mubr.bf16.mxu0 %v948
        %1117 = vmatmul.mubr.bf16.gmra.mrb[0].mxu0 %v906
        %v1118 = vpop.f32.mrb[0].mxu0
        %v1119 = vadd.f32 %v986, %v1118
        %v1120 = vpop.f32.mrb[0].mxu0
        %v1121 = vpop.f32.mrb[0].mxu0
        %v1122 = vadd.f32 %v986, %v1121
        %v1123 = vpop.f32.mrb[0].mxu0
        %1124 = vdwg.mxu0
        %v1125 = vmax.f32 %v1119, 0.0
        %v1126 = vmax.f32 %v1122, 0.0
        %v1127 = vld [vmem:[%s555] sm:$0xff]
        %v1128 = vld [vmem:[%s555 + $0x8] sm:$0xff]
        %1129 = vset.pattern.permute.xlu0 0
        %1130 = vperm.xlu0 %1129, %v1127
        %v1131 = vpop.permute.xlu0 %1130
        %1132 = vset.pattern.permute.xlu0 0
        %1133 = vperm.xlu0 %1132, %v1128
        %v1134 = vpop.permute.xlu0 %1133
        %vm1135 = vcmp.eq.s32.totalorder %v568, %v1131
        %vm1136 = vcmp.eq.s32.totalorder %v568, %v1134
        %v1137 = vsel %vm1135, 1.0, 0.0
        %v1138 = vsel %vm1136, 1.0, 0.0
        %v1140 = vsel %vm580, %v1137, 0
        %v1143 = vsel %vm580, %v1138, 0
        %1145 = vmatprep.subr.mxu0 0.0
        %1146 = vmatpush1.msra.mxu0 %v1125
        %1147 = vmatprep.subr.mxu0 0.0
        %1148 = vmatpush1.msra.mxu0 %v1126
        %1149 = vmatprep.subr.mxu0 0.0
        %1150 = vmatpush1.msra.mxu0 0.0
        %1151 = vmatprep.subr.mxu0 0.0
        %1152 = vmatpush1.msra.mxu0 0.0
        %1153 = vmatprep.subr.mxu0 0.0
        %1154 = vmatpush1.msra.mxu0 0.0
        %1155 = vmatprep.subr.mxu0 0.0
        %1156 = vmatpush1.msra.mxu0 0.0
        %1157 = vmatprep.subr.mxu0 0.0
        %1158 = vmatpush1.msra.mxu0 0.0
        %1159 = vmatprep.subr.mxu0 0.0
        %1160 = vmatpush1.msra.mxu0 0.0
        %1161 = vmatprep.subr.mxu0 0.0
        %1162 = vmatpush1.msra.mxu0 0.0
        %1163 = vmatprep.subr.mxu0 0.0
        %1164 = vmatpush1.msra.mxu0 0.0
        %1165 = vmatprep.subr.mxu0 0.0
        %1166 = vmatpush1.msra.mxu0 0.0
        %1167 = vmatprep.subr.mxu0 0.0
        %1168 = vmatpush1.msra.mxu0 0.0
        %1169 = vmatprep.subr.mxu0 0.0
        %1170 = vmatpush1.msra.mxu0 0.0
        %1171 = vmatprep.subr.mxu0 0.0
        %1172 = vmatpush1.msra.mxu0 0.0
        %1173 = vmatprep.subr.mxu0 0.0
        %1174 = vmatpush1.msra.mxu0 0.0
        %1175 = vmatprep.subr.mxu0 0.0
        %1176 = vmatpush1.msra.mxu0 0.0
        %1177 = vmatprep.subr.mxu0 0.0
        %1178 = vmatpush1.msra.mxu0 0.0
        %1179 = vmatprep.subr.mxu0 0.0
        %1180 = vmatpush1.msra.mxu0 0.0
        %1181 = vmatprep.subr.mxu0 0.0
        %1182 = vmatpush1.msra.mxu0 0.0
        %1183 = vmatprep.subr.mxu0 0.0
        %1184 = vmatpush1.msra.mxu0 0.0
        %1185 = vmatprep.subr.mxu0 0.0
        %1186 = vmatpush1.msra.mxu0 0.0
        %1187 = vmatprep.subr.mxu0 0.0
        %1188 = vmatpush1.msra.mxu0 0.0
        %1189 = vmatprep.subr.mxu0 0.0
        %1190 = vmatpush1.msra.mxu0 0.0
        %1191 = vmatprep.subr.mxu0 0.0
        %1192 = vmatpush1.msra.mxu0 0.0
        %1193 = vmatprep.subr.mxu0 0.0
        %1194 = vmatpush1.msra.mxu0 0.0
        %1195 = vmatprep.subr.mxu0 0.0
        %1196 = vmatpush1.msra.mxu0 0.0
        %1197 = vmatprep.subr.mxu0 0.0
        %1198 = vmatpush1.msra.mxu0 0.0
        %1199 = vmatprep.subr.mxu0 0.0
        %1200 = vmatpush1.msra.mxu0 0.0
        %1201 = vmatprep.subr.mxu0 0.0
        %1202 = vmatpush1.msra.mxu0 0.0
        %1203 = vmatprep.subr.mxu0 0.0
        %1204 = vmatpush1.msra.mxu0 0.0
        %1205 = vmatprep.subr.mxu0 0.0
        %1206 = vmatpush1.msra.mxu0 0.0
        %1207 = vmatprep.subr.mxu0 0.0
        %1208 = vmatpush1.msra.mxu0 0.0
        %1209 = vmatprep.mubr.f32.mxu0 0.0
        %1210 = vmatmul.mubr.f32.gmra.mrb[0].mxu0 %v1140
        %v1211 = vpop.f32.mrb[0].mxu0
        %v1212 = vadd.f32 0.0, %v1211
        %v1213 = vpop.f32.mrb[0].mxu0
        %1214 = vmatprep.mubr.f32.mxu0 0.0
        %1215 = vmatmul.mubr.f32.gmra.mrb[0].mxu0 %v1143
        %v1216 = vpop.f32.mrb[0].mxu0
        %v1217 = vadd.f32 0.0, %v1216
        %v1218 = vpop.f32.mrb[0].mxu0
        %1219 = vdwg.mxu0
        %v1220 = vmul.f32 %v897, %v1125
        %v1221 = vmul.f32 %v897, %v1126
        %v1222 = vmul.f32 %v901, %v1212
        %v1223 = vmul.f32 %v901, %v1217
        %v1224 = vadd.f32 %v1220, %v1222
        %v1225 = vadd.f32 %v1221, %v1223
        %v1226 = vpack.c.bf16 %v1225, %v1224
        %1227 = vmatprep.subr.bf16.mxu0 0
        %1228 = vmatpush1.bf16.msra.mxu0 %v1226
        %1229 = vmatprep.subr.bf16.mxu0 0
        %1230 = vmatpush1.bf16.msra.mxu0 0
        %1231 = vmatprep.subr.bf16.mxu0 0
        %1232 = vmatpush1.bf16.msra.mxu0 0
        %1233 = vmatprep.subr.bf16.mxu0 0
        %1234 = vmatpush1.bf16.msra.mxu0 0
        %1235 = vmatprep.subr.bf16.mxu0 0
        %1236 = vmatpush1.bf16.msra.mxu0 0
        %1237 = vmatprep.subr.bf16.mxu0 0
        %1238 = vmatpush1.bf16.msra.mxu0 0
        %1239 = vmatprep.subr.bf16.mxu0 0
        %1240 = vmatpush1.bf16.msra.mxu0 0
        %1241 = vmatprep.subr.bf16.mxu0 0
        %1242 = vmatpush1.bf16.msra.mxu0 0
        %1243 = vmatprep.subr.bf16.mxu0 0
        %1244 = vmatpush1.bf16.msra.mxu0 0
        %1245 = vmatprep.subr.bf16.mxu0 0
        %1246 = vmatpush1.bf16.msra.mxu0 0
        %1247 = vmatprep.subr.bf16.mxu0 0
        %1248 = vmatpush1.bf16.msra.mxu0 0
        %1249 = vmatprep.subr.bf16.mxu0 0
        %1250 = vmatpush1.bf16.msra.mxu0 0
        %1251 = vmatprep.subr.bf16.mxu0 0
        %1252 = vmatpush1.bf16.msra.mxu0 0
        %1253 = vmatprep.subr.bf16.mxu0 0
        %1254 = vmatpush1.bf16.msra.mxu0 0
        %1255 = vmatprep.subr.bf16.mxu0 0
        %1256 = vmatpush1.bf16.msra.mxu0 0
        %1257 = vmatprep.subr.bf16.mxu0 0
        %1258 = vmatpush1.bf16.msra.mxu0 0
        %1259 = vmatprep.mubr.bf16.mxu0 0
        %1260 = vmatmul.mubr.bf16.gmra.mrb[0].mxu0 %v582
        %v1261 = vpop.f32.mrb[0].mxu0
        %v1262 = vadd.f32 0.0, %v1261
        %v1263 = vpop.f32.mrb[0].mxu0
        %v1264 = vpop.f32.mrb[0].mxu0
        %v1265 = vadd.f32 0.0, %v1264
        %v1266 = vpop.f32.mrb[0].mxu0
        %1267 = vdwg.mxu0
        %v1268 = vpack.c.bf16 %v1265, %v1262
        %1269 = vmatprep.subr.bf16.mxu0 0
        %1270 = vmatpush1.bf16.msra.mxu0 %v1052
        %1271 = vmatprep.subr.bf16.mxu0 0
        %1272 = vmatpush1.bf16.msra.mxu0 %v1053
        %1273 = vmatprep.subr.bf16.mxu0 0
        %1274 = vmatpush1.bf16.msra.mxu0 %v1054
        %1275 = vmatprep.subr.bf16.mxu0 0
        %1276 = vmatpush1.bf16.msra.mxu0 %v1055
        %1277 = vmatprep.subr.bf16.mxu0 0
        %1278 = vmatpush1.bf16.msra.mxu0 %v1056
        %1279 = vmatprep.subr.bf16.mxu0 0
        %1280 = vmatpush1.bf16.msra.mxu0 %v1057
        %1281 = vmatprep.subr.bf16.mxu0 0
        %1282 = vmatpush1.bf16.msra.mxu0 %v1058
        %1283 = vmatprep.subr.bf16.mxu0 0
        %1284 = vmatpush1.bf16.msra.mxu0 %v1059
        %1285 = vmatprep.subr.bf16.mxu0 0
        %1286 = vmatpush1.bf16.msra.mxu0 %v1060
        %1287 = vmatprep.subr.bf16.mxu0 0
        %1288 = vmatpush1.bf16.msra.mxu0 %v1061
        %1289 = vmatprep.subr.bf16.mxu0 0
        %1290 = vmatpush1.bf16.msra.mxu0 %v1062
        %1291 = vmatprep.subr.bf16.mxu0 0
        %1292 = vmatpush1.bf16.msra.mxu0 %v1063
        %1293 = vmatprep.subr.bf16.mxu0 0
        %1294 = vmatpush1.bf16.msra.mxu0 %v1064
        %1295 = vmatprep.subr.bf16.mxu0 0
        %1296 = vmatpush1.bf16.msra.mxu0 %v1065
        %1297 = vmatprep.subr.bf16.mxu0 0
        %1298 = vmatpush1.bf16.msra.mxu0 %v1066
        %1299 = vmatprep.subr.bf16.mxu0 0
        %1300 = vmatpush1.bf16.msra.mxu0 %v1067
        %1301 = vmatprep.mubr.bf16.mxu0 %v1268
        %1302 = vmatmul.mubr.bf16.gmra.mrb[0].mxu0 %v1226
        %v1303 = vpop.f32.mrb[0].mxu0
        %v1304 = vadd.f32 %v986, %v1303
        %v1305 = vpop.f32.mrb[0].mxu0
        %v1306 = vpop.f32.mrb[0].mxu0
        %v1307 = vadd.f32 %v986, %v1306
        %v1308 = vpop.f32.mrb[0].mxu0
        %1309 = vdwg.mxu0
        %v1310 = vmax.f32 %v1304, 0.0
        %v1311 = vmax.f32 %v1307, 0.0
        %v1312 = vld [vmem:[%s560] sm:$0xff]
        %v1313 = vld [vmem:[%s560 + $0x8] sm:$0xff]
        %1315 = vset.pattern.permute.xlu0 0
        %1316 = vperm.xlu0 %1315, %v1312
        %v1317 = vpop.permute.xlu0 %1316
        %1320 = vset.pattern.permute.xlu0 0
        %1321 = vperm.xlu0 %1320, %v1313
        %v1322 = vpop.permute.xlu0 %1321
        %v1324 = vmul.f32 %v1310, %v1317
        %v1325 = vmul.f32 %v1311, %v1322
        %v1326 = vadd.f32 %v1324, %v1325
        %v1327 = vrot.slane %v1326, 4
        %v1328 = vadd.f32 %v1326, %v1327
        %v1329 = vrot.slane %v1328, 2
        %v1330 = vadd.f32 %v1328, %v1329
        %v1331 = vrot.slane %v1330, 1
        %v1332 = vadd.f32 %v1330, %v1331
        %v1333 = vpack.c.bf16 %v1332, %v1332
        %v1334 = vld [vmem:[#allocation9] sm:$0xf]
        %v1335 = vld [vmem:[#allocation9 + $0x4] sm:$0xf]
        %v1336 = vld [vmem:[#allocation9 + $0x8] sm:$0xf]
        %v1337 = vld [vmem:[#allocation9 + $0xc] sm:$0xf]
        %v1338 = vld [vmem:[#allocation9 + $0x10] sm:$0xf]
        %v1339 = vld [vmem:[#allocation9 + $0x14] sm:$0xf]
        %v1340 = vld [vmem:[#allocation9 + $0x18] sm:$0xf]
        %v1341 = vld [vmem:[#allocation9 + $0x1c] sm:$0xf]
        %v1342 = vld [vmem:[#allocation9 + $0x20] sm:$0xf]
        %v1343 = vld [vmem:[#allocation9 + $0x24] sm:$0xf]
        %v1344 = vld [vmem:[#allocation9 + $0x28] sm:$0xf]
        %v1345 = vld [vmem:[#allocation9 + $0x2c] sm:$0xf]
        %v1346 = vld [vmem:[#allocation9 + $0x30] sm:$0xf]
        %v1347 = vld [vmem:[#allocation9 + $0x34] sm:$0xf]
        %v1348 = vld [vmem:[#allocation9 + $0x38] sm:$0xf]
        %v1349 = vld [vmem:[#allocation9 + $0x3c] sm:$0xf]
        %v1350 = vld [vmem:[%s11] sm:$0x1]
        %v1367 = vunpack.c.l.b16 %v1334
        %v1368 = vunpack.c.l.b16 %v1335
        %v1369 = vunpack.c.l.b16 %v1336
        %v1370 = vunpack.c.l.b16 %v1337
        %v1371 = vunpack.c.l.b16 %v1338
        %v1372 = vunpack.c.l.b16 %v1339
        %v1373 = vunpack.c.l.b16 %v1340
        %v1374 = vunpack.c.l.b16 %v1341
        %v1375 = vunpack.c.l.b16 %v1342
        %v1376 = vunpack.c.l.b16 %v1343
        %v1377 = vunpack.c.l.b16 %v1344
        %v1378 = vunpack.c.l.b16 %v1345
        %v1379 = vunpack.c.l.b16 %v1346
        %v1380 = vunpack.c.l.b16 %v1347
        %v1381 = vunpack.c.l.b16 %v1348
        %v1382 = vunpack.c.l.b16 %v1349
        %v1383 = vpack.c.b16 %v1368, %v1367
        %v1384 = vpack.c.b16 %v1370, %v1369
        %v1385 = vpack.c.b16 %v1372, %v1371
        %v1386 = vpack.c.b16 %v1374, %v1373
        %v1387 = vpack.c.b16 %v1376, %v1375
        %v1388 = vpack.c.b16 %v1378, %v1377
        %v1389 = vpack.c.b16 %v1380, %v1379
        %v1390 = vpack.c.b16 %v1382, %v1381
        %1399 = vmatprep.subr.bf16.mxu0 0
        %1400 = vmatpush1.bf16.msra.mxu0 %v1383
        %1401 = vmatprep.subr.bf16.mxu0 0
        %1402 = vmatpush1.bf16.msra.mxu0 %v1384
        %1403 = vmatprep.subr.bf16.mxu0 0
        %1404 = vmatpush1.bf16.msra.mxu0 %v1385
        %1405 = vmatprep.subr.bf16.mxu0 0
        %1406 = vmatpush1.bf16.msra.mxu0 %v1386
        %1407 = vmatprep.subr.bf16.mxu0 0
        %1408 = vmatpush1.bf16.msra.mxu0 %v1387
        %1409 = vmatprep.subr.bf16.mxu0 0
        %1410 = vmatpush1.bf16.msra.mxu0 %v1388
        %1411 = vmatprep.subr.bf16.mxu0 0
        %1412 = vmatpush1.bf16.msra.mxu0 %v1389
        %1413 = vmatprep.subr.bf16.mxu0 0
        %1414 = vmatpush1.bf16.msra.mxu0 %v1390
        %1415 = vmatprep.subr.bf16.mxu0 0
        %1416 = vmatpush1.bf16.msra.mxu0 0
        %1417 = vmatprep.subr.bf16.mxu0 0
        %1418 = vmatpush1.bf16.msra.mxu0 0
        %1419 = vmatprep.subr.bf16.mxu0 0
        %1420 = vmatpush1.bf16.msra.mxu0 0
        %1421 = vmatprep.subr.bf16.mxu0 0
        %1422 = vmatpush1.bf16.msra.mxu0 0
        %1423 = vmatprep.subr.bf16.mxu0 0
        %1424 = vmatpush1.bf16.msra.mxu0 0
        %1425 = vmatprep.subr.bf16.mxu0 0
        %1426 = vmatpush1.bf16.msra.mxu0 0
        %1427 = vmatprep.subr.bf16.mxu0 0
        %1428 = vmatpush1.bf16.msra.mxu0 0
        %1429 = vmatprep.subr.bf16.mxu0 0
        %1430 = vmatpush1.bf16.msra.mxu0 0
        %1431 = vmatprep.mubr.bf16.mxu0 0
        %1432 = vmatmul.mubr.bf16.gmra.mrb[0].mxu0 %v1333
        %v1433 = vpop.f32.mrb[0].mxu0
        %v1434 = vadd.f32 %v1350, %v1433
        %v1435 = vpop.f32.mrb[0].mxu0
        %v1436 = vpop.f32.mrb[0].mxu0
        %v1437 = vpop.f32.mrb[0].mxu0
        %1438 = vdwg.mxu0
        %vm1439 = vcmp.lt.s32.totalorder %v568, 4
        %v1440 = vsel %vm1439, %v1434, -1e+30
        %vm1441 = vcmask 1040384
        %v1442 = vsel %vm1441, %v1440, -inf
        %1443 = vmax.xlane.f32.xlu0 %v1442
        %v1444 = vpop.xlane.xlu0 %1443
        %v1445 = vsub.f32 %v1440, %v1444
        %v1446 = vmul.f32 %v1445, 1.442695
        %v1447 = vpow.pop %v1446
        %v1448 = vsel %vm1441, %v1447, 0.0
        %1449 = vadd.xlane.f32.xlu0 %v1448
        %v1450 = vpop.xlane.xlu0 %1449
        %v1451 = vlog2.pop %v1450
        %v1452 = vmul.f32 %v1451, 0.6931472
        %v1453 = vadd.f32 %v1444, %v1452
        %v1454 = vsub.f32 %v1440, %v1453
        %1455 = vst [vmem:[%s545] sm:$0x1] %v1454
        %s1456 = sand.u32 %s319, 1
        %s1457 = scalar_lea.sflag [#allocation5], %s1456
        %s1458 = sand.u32 %s319, 1
        %s1459 = scalar_lea.vmem [#allocation11], %s1458
        // Predicated region
        $region85: #{tpu_custom_call.1} parent=67 // pred_check
          %p1460 = pneg %p329
        $region86: #{tpu_custom_call.1} parent=67 // pred_check_branch
          %1462 = sbr.rel (%p1460) target = $region88
        $region87: #{tpu_custom_call.1} parent=67 // pred_region
          %s1464 = ssub.s32 16, 16
          %1465 = vsyncadd %s1457, %s1464
          %s1466 = smul.addr %s34, 16
          %s1467 = scalar_lea.hbm %s12, %s1466
          %s1469 = sshll.u32 %s1459, 4
          %s1470 = int_to_ptr.vmem [resolvable:$true] %s1469
          %1472 = dma.vmem_to_hbm [thread:$0]  %s1470, 16, %s1467, %s1457
        $region88: #{tpu_custom_call.1} parent=67 // pred_fallthru
          _
      $region68: #{tpu_custom_call.1} parent=5 // pred_fallthru
        _
      %p1473 = scmp.le.s32.totalorder 2, %s29
      // Predicated region
      $region89: #{tpu_custom_call.1} parent=5 // pred_check
        %p1474 = pneg %p1473
      $region90: #{tpu_custom_call.1} parent=5 // pred_check_branch
        %1476 = sbr.rel (%p1474) target = $region92
      $region91: #{tpu_custom_call.1} parent=5 // pred_region
        %s1477 = ssub.s32 %s29, 2
        // Predicated region
        $region93: #{tpu_custom_call.1} parent=91 // pred_check
          %p1478 = pneg %p335
        $region94: #{tpu_custom_call.1} parent=91 // pred_check_branch
          %1480 = sbr.rel (%p1478) target = $region96
        $region95: #{tpu_custom_call.1} parent=91 // pred_region
          %s1481 = sand.u32 %s320, 1
          %s1482 = scalar_lea.sflag [#allocation5], %s1481
          %s1483 = sand.u32 %s320, 1
          %s1484 = scalar_lea.vmem [#allocation11], %s1483
          %1485 = dma.done %s1482, 16
        $region96: #{tpu_custom_call.1} parent=91 // pred_fallthru
          _
      $region92: #{tpu_custom_call.1} parent=5 // pred_fallthru
        _
    $region6: #{tpu_custom_call.1} parent=1 // loop_footer
      %s33 = sadd.s32 1, %s29
    $region7: #{tpu_custom_call.1} parent=1 // loop_footer_branch
      %28 = sbr.rel target = $region3
    $region8: #{tpu_custom_call.1} parent=1 // loop_exit
      _
    %1486 = vsyncpa [#allocation4], 1
    %s1487 = scalar_lea.sflag [#allocation4], 1
    %1488 = vsyncpa %s1487, 1
    %1489 = vsyncpa [#allocation7], 1
    %s1490 = scalar_lea.sflag [#allocation7], 1
    %1491 = vsyncpa %s1490, 1
    %1492 = vsyncpa [#allocation10], 1
    %1493 = vsyncpa [#allocation5], 1
    %s1494 = scalar_lea.sflag [#allocation5], 1
    %1495 = vsyncpa %s1494, 1

</llo_original>
